<compile_context>
chip_gen: v7x
topology: tpu7x:2x2x1
jax: 0.10.0
libtpu: 0.0.40
codegen_flags: <defaults>
</compile_context>

<pallas_src>
import jax
import jax.numpy as jnp
from jax import lax
from jax.experimental import pallas as pl
from jax.experimental.pallas import tpu as pltpu

_CHUNK = 8  # one sublane group of hidden channels per streaming step


def _round_up(x: int, m: int) -> int:
    return ((x + m - 1) // m) * m


def _vmem_capacity_bytes() -> int:
    try:
        return int(pltpu.get_tpu_info().vmem_capacity_bytes)
    except Exception:
        return 64 * 1024 * 1024  # conservative (v7x-sized) fallback


def _estimate_vmem_bytes(t_ld: int, D: int, Dh_pad: int, Le_pad: int) -> int:
    """Rough per-grid-step VMEM footprint (double-buffered I/O + scratch + temps)."""
    f = 4  # float32
    bufs = f * (
        2 * t_ld * D              # decoder tile
        + 2 * Dh_pad * Le_pad     # eprojT
        + 2 * 8 * Le_pad          # mask + b2 bias (sublane padded)
        + 2 * Le_pad * D          # encoder states
        + 2 * Dh_pad * D          # W1_dec
        + 2 * Dh_pad * 128        # w2 column (lane padded)
        + 2 * t_ld * D            # context out
        + 2 * t_ld * Le_pad)      # attn out
    scratch = f * (Dh_pad * max(t_ld, 128) + t_ld * _CHUNK * Le_pad)
    temps = f * (3 * t_ld * _CHUNK * Le_pad + 3 * t_ld * Le_pad)
    return bufs + scratch + temps


def _attention_mlp_kernel(dec_ref, eprojT_ref, bias_ref, enc_ref, w1dec_ref, w2_ref,
                          ctx_ref, attn_ref, dprojT_ref, acc_ref):
    """One (batch b, decoder-tile j) grid step.

    dec_ref    : (1, t_ld, D)        decoder tile
    eprojT_ref : (1, Dh_pad, Le_pad) W1_enc @ enc^T + b1 (precomputed, XLA)
    bias_ref   : (1, 1, Le_pad)      additive mask (0 or -inf) + b2 (precomputed)
    enc_ref    : (1, Le_pad, D)      encoder states (context matmul)
    w1dec_ref  : (Dh_pad, D)         decoder half of W1 (torch W1[:, D:])
    w2_ref     : (Dh_pad, 1)         scorer weights
    dprojT_ref : (Dh_pad, t_ld) f32  scratch: decoder projection, channels on sublanes
    acc_ref    : (t_ld, 8, Le_pad)   scratch: streaming partial-sum accumulator
    """
    Dh_pad, t_ld = dprojT_ref.shape
    n_chunks = Dh_pad // _CHUNK

    # Decoder projection on the MXU, channel axis on sublanes so the streaming
    # loop slices along sublanes (no lane-dim dynamic slicing).
    dprojT_ref[...] = lax.dot_general(
        w1dec_ref[...], dec_ref[0],
        dimension_numbers=(((1,), (1,)), ((), ())),
        preferred_element_type=jnp.float32)                      # (Dh_pad, t_ld)

    acc_ref[...] = jnp.zeros_like(acc_ref)

    def chunk_body(c, carry):
        off = pl.multiple_of(c * _CHUNK, _CHUNK)
        dpT = dprojT_ref[pl.ds(off, _CHUNK), :]                  # (8, t_ld)
        ep = eprojT_ref[0, pl.ds(off, _CHUNK), :]                # (8, Le_pad)
        wc = w2_ref[pl.ds(off, _CHUNK), :]                       # (8, 1)
        # t[i, c, j] = d_proj[i, c] + eprojT[c, j]; only (t_ld, 8, Le_pad) live.
        t = dpT.T[:, :, None] + ep[None, :, :]
        acc_ref[...] += jnp.maximum(t, 0.0) * wc[None, :, :]
        return carry

    lax.fori_loop(0, n_chunks, chunk_body, 0, unroll=n_chunks <= 8)

    # Scores: one sublane reduce; mask (+b2) already folded into bias.
    scores = jnp.sum(acc_ref[...], axis=1) + bias_ref[0]         # (t_ld, Le_pad)

    # Softmax over encoder positions (lane axis); padded/masked cols -> 0 weight.
    m = jnp.max(scores, axis=-1, keepdims=True)
    p = jnp.exp(scores - m)
    denom = jnp.sum(p, axis=-1, keepdims=True)
    attn = p * pl.reciprocal(denom, approx=False)

    # context = attn @ encoder_states on the MXU.
    ctx = jnp.dot(attn, enc_ref[0], preferred_element_type=jnp.float32)

    ctx_ref[0] = ctx.astype(ctx_ref.dtype)
    attn_ref[0] = attn.astype(attn_ref.dtype)


@jax.jit
def attention_mlp(decoder_states, encoder_states, w1, b1, w2, b2):
    """decoder_states (B, Ld, D), encoder_states (B, Le, D).
    w1: (D, 2D) [torch Linear(2D, D).weight], b1: (D,)
    w2: (1, D)  [torch Linear(D, 1).weight],  b2: (1,)
    Returns (context (B, Ld, D), attn (B, Ld, Le))."""
    B, Ld, D = decoder_states.shape
    _, Le, _ = encoder_states.shape
    f32 = jnp.float32

    Le_pad = _round_up(Le, 128)            # lane-dense scores / attn, full MXU width
    Dh_pad = _round_up(D, _CHUNK)          # hidden channels, chunked by 8

    # ---- generation-aware tiling -------------------------------------------
    cap = _vmem_capacity_bytes()
    budget = (cap * 5) // 8
    t_ld = min(512, _round_up(Ld, 8))
    while t_ld > 8 and _estimate_vmem_bytes(t_ld, D, Dh_pad, Le_pad) > budget:
        t_ld = max(8, (t_ld // 2) // 8 * 8)
    Ld_pad = _round_up(Ld, t_ld)
    n_ld = Ld_pad // t_ld
    vmem_limit = int(min(cap - 2 * 1024 * 1024,
                         max(32 * 1024 * 1024,
                             _estimate_vmem_bytes(t_ld, D, Dh_pad, Le_pad)
                             + 8 * 1024 * 1024)))

    # ---- padding + XLA-side precompute --------------------------------------
    dec_p = jnp.pad(decoder_states.astype(f32), ((0, 0), (0, Ld_pad - Ld), (0, 0)))
    enc_p = jnp.pad(encoder_states.astype(f32), ((0, 0), (0, Le_pad - Le), (0, 0)))

    w1f = w1.astype(f32)
    pad_h = Dh_pad - D
    w1_enc = jnp.pad(w1f[:, :D], ((0, pad_h), (0, 0)))            # (Dh_pad, D)
    w1_dec = jnp.pad(w1f[:, D:], ((0, pad_h), (0, 0)))            # (Dh_pad, D)
    b1_p = jnp.pad(b1.astype(f32), (0, pad_h))                    # (Dh_pad,)
    w2_col = jnp.pad(w2.astype(f32).reshape(-1), (0, pad_h)).reshape(Dh_pad, 1)

    # Encoder-side projection (+b1) and additive padding mask with b2 folded in.
    eprojT = jnp.einsum("dk,blk->bdl", w1_enc, enc_p) + b1_p[None, :, None]
    bias = (jnp.where(enc_p[:, :, 0] == 0.0, -jnp.inf, 0.0)[:, None, :]
            + b2.astype(f32).reshape(1, 1, 1))                    # (B, 1, Le_pad)

    grid_spec = pltpu.PrefetchScalarGridSpec(
        num_scalar_prefetch=0,
        grid=(B, n_ld),
        in_specs=[
            pl.BlockSpec((1, t_ld, D), lambda b, j: (b, j, 0)),          # decoder tile
            pl.BlockSpec((1, Dh_pad, Le_pad), lambda b, j: (b, 0, 0)),   # eprojT
            pl.BlockSpec((1, 1, Le_pad), lambda b, j: (b, 0, 0)),        # mask + b2
            pl.BlockSpec((1, Le_pad, D), lambda b, j: (b, 0, 0)),        # encoder
            pl.BlockSpec((Dh_pad, D), lambda b, j: (0, 0)),              # W1_dec
            pl.BlockSpec((Dh_pad, 1), lambda b, j: (0, 0)),              # w2 column
        ],
        out_specs=[
            pl.BlockSpec((1, t_ld, D), lambda b, j: (b, j, 0)),          # context
            pl.BlockSpec((1, t_ld, Le_pad), lambda b, j: (b, j, 0)),     # attn
        ],
        scratch_shapes=[
            pltpu.VMEM((Dh_pad, t_ld), f32),                             # decoder proj
            pltpu.VMEM((t_ld, _CHUNK, Le_pad), f32),                     # accumulator
        ],
    )

    ctx_p, attn_p = pl.pallas_call(
        _attention_mlp_kernel,
        out_shape=(
            jax.ShapeDtypeStruct((B, Ld_pad, D), f32),
            jax.ShapeDtypeStruct((B, Ld_pad, Le_pad), f32),
        ),
        grid_spec=grid_spec,
        compiler_params=pltpu.CompilerParams(
            dimension_semantics=("parallel", "parallel"),
            vmem_limit_bytes=vmem_limit,
        ),
    )(dec_p, eprojT, bias, enc_p, w1_dec, w2_col)

    ctx = ctx_p if Ld_pad == Ld else ctx_p[:, :Ld, :]
    attn = attn_p if (Ld_pad == Ld and Le_pad == Le) else attn_p[:, :Ld, :Le]
    return ctx, attn


def _reference(decoder_states, encoder_states, w1, b1, w2, b2):
    """Pure-JAX transcription of the PyTorch forward (for verification)."""
    B, Le, D = encoder_states.shape
    _, Ld, _ = decoder_states.shape
    enc_exp = jnp.broadcast_to(encoder_states[:, None, :, :], (B, Ld, Le, D))
    dec_exp = jnp.broadcast_to(decoder_states[:, :, None, :], (B, Ld, Le, D))
    mlp_in = jnp.concatenate([enc_exp, dec_exp], axis=-1).reshape(-1, 2 * D)
    hidden = jnp.maximum(mlp_in @ w1.T + b1, 0.0)
    scores = (hidden @ w2.T + b2).reshape(B, Ld, Le)
    mask = (encoder_states[:, :, 0:1] == 0.0).transpose(0, 2, 1)   # (B, 1, Le)
    scores = jnp.where(mask, -jnp.inf, scores)
    attn = jax.nn.softmax(scores, axis=-1)
    ctx = jnp.einsum("bqk,bkd->bqd", attn, encoder_states)
    return ctx, attn


if __name__ == "__main__":
    key = jax.random.PRNGKey(0)
    B, dec_len, enc_len, dim = 2, 8, 8, 32

    k_dec, k_enc, k_w1, k_b1, k_w2, k_b2 = jax.random.split(key, 6)
    decoder_states = jax.random.normal(k_dec, (B, dec_len, dim), dtype=jnp.float32)
    encoder_states = jax.random.normal(k_enc, (B, enc_len, dim), dtype=jnp.float32)

    # Deterministic parameter init (matches torch nn.Linear uniform ±1/sqrt(fan_in)).
    s1 = 1.0 / jnp.sqrt(2.0 * dim)
    w1 = jax.random.uniform(k_w1, (dim, 2 * dim), minval=-s1, maxval=s1, dtype=jnp.float32)
    b1 = jax.random.uniform(k_b1, (dim,), minval=-s1, maxval=s1, dtype=jnp.float32)
    s2 = 1.0 / jnp.sqrt(float(dim))
    w2 = jax.random.uniform(k_w2, (1, dim), minval=-s2, maxval=s2, dtype=jnp.float32)
    b2 = jax.random.uniform(k_b2, (1,), minval=-s2, maxval=s2, dtype=jnp.float32)

    ctx, attn = attention_mlp(decoder_states, encoder_states, w1, b1, w2, b2)
    jax.block_until_ready((ctx, attn))

    ctx_ref, attn_ref = _reference(decoder_states, encoder_states, w1, b1, w2, b2)
    assert ctx.shape == (B, dec_len, dim) and attn.shape == (B, dec_len, enc_len)
    assert jnp.allclose(ctx, ctx_ref, atol=1e-5, rtol=1e-5)
    assert jnp.allclose(attn, attn_ref, atol=1e-5, rtol=1e-5)

    print("KERNEL_OK")
</pallas_src>

<mosaic_0001>
module attributes {stable_mosaic.version = 11 : i64} {
  func.func @_attention_mlp_kernel(%arg0: i32, %arg1: i32, %arg2: memref<1x8x32xf32, #tpu.memory_space<vmem>>, %arg3: memref<1x32x128xf32, #tpu.memory_space<vmem>>, %arg4: memref<1x1x128xf32, #tpu.memory_space<vmem>>, %arg5: memref<1x128x32xf32, #tpu.memory_space<vmem>>, %arg6: memref<32x32xf32, #tpu.memory_space<vmem>>, %arg7: memref<32x1xf32, #tpu.memory_space<vmem>>, %arg8: memref<1x8x32xf32, #tpu.memory_space<vmem>>, %arg9: memref<1x8x128xf32, #tpu.memory_space<vmem>>, %arg10: memref<32x8xf32, #tpu.memory_space<vmem>>, %arg11: memref<8x8x128xf32, #tpu.memory_space<vmem>>) attributes {dimension_semantics = [#tpu.dimension_semantics<parallel>, #tpu.dimension_semantics<parallel>], iteration_bounds = array<i64: 2, 1>, scalar_prefetch = 0 : i64, scratch_operands = 2 : i64, tpu.core_type = #tpu.core_type<tc>, window_params = [{transform_indices = @transform_0, window_bounds = array<i64: 1, 8, 32>}, {transform_indices = @transform_1, window_bounds = array<i64: 1, 32, 128>}, {transform_indices = @transform_2, window_bounds = array<i64: 1, 1, 128>}, {transform_indices = @transform_3, window_bounds = array<i64: 1, 128, 32>}, {pipeline_mode = #tpu.pipeline_mode<synchronous>, transform_indices = @transform_4, window_bounds = array<i64: 32, 32>}, {pipeline_mode = #tpu.pipeline_mode<synchronous>, transform_indices = @transform_5, window_bounds = array<i64: 32, 1>}, {transform_indices = @transform_6, window_bounds = array<i64: 1, 8, 32>}, {transform_indices = @transform_7, window_bounds = array<i64: 1, 8, 128>}]} {
    %c0 = arith.constant 0 : index
    %c0_0 = arith.constant 0 : index
    %0 = vector.load %arg6[%c0, %c0_0] : memref<32x32xf32, #tpu.memory_space<vmem>>, vector<32x32xf32>
    %c0_1 = arith.constant 0 : index
    %c0_2 = arith.constant 0 : index
    %c0_3 = arith.constant 0 : index
    %1 = vector.load %arg2[%c0_1, %c0_2, %c0_3] : memref<1x8x32xf32, #tpu.memory_space<vmem>>, vector<1x8x32xf32>
    %2 = vector.shape_cast %1 : vector<1x8x32xf32> to vector<8x32xf32>
    %cst = arith.constant dense<0.000000e+00> : vector<32x8xf32>
    %3 = tpu.matmul %0, %2, %cst {dimension_numbers = #tpu.dot_dimension_numbers<[1], [1], [0], [0], [0, 0, 1, 0], [], []>} : vector<32x32xf32>, vector<8x32xf32>, vector<32x8xf32> -> vector<32x8xf32>
    %c0_4 = arith.constant 0 : index
    %c0_5 = arith.constant 0 : index
    %4 = vector.load %arg10[%c0_4, %c0_5] : memref<32x8xf32, #tpu.memory_space<vmem>>, vector<32x8xf32>
    tpu.vector_store %arg10[%c0_4, %c0_5], %3 {strides = array<i32>} : memref<32x8xf32, #tpu.memory_space<vmem>>, vector<32x8xf32>,
    %cst_6 = arith.constant 0.000000e+00 : f32
    %5 = vector.broadcast %cst_6 : f32 to vector<8x8x128xf32>
    %c0_7 = arith.constant 0 : index
    %c0_8 = arith.constant 0 : index
    %c0_9 = arith.constant 0 : index
    %6 = vector.load %arg11[%c0_7, %c0_8, %c0_9] : memref<8x8x128xf32, #tpu.memory_space<vmem>>, vector<8x8x128xf32>
    tpu.vector_store %arg11[%c0_7, %c0_8, %c0_9], %5 {strides = array<i32>} : memref<8x8x128xf32, #tpu.memory_space<vmem>>, vector<8x8x128xf32>,
    %c0_i32 = arith.constant 0 : i32
    %c8_i32 = arith.constant 8 : i32
    %7 = arith.muli %c0_i32, %c8_i32 : i32
    %8 = tpu.assume_multiple %7, 8 : i32
    %9 = arith.index_cast %8 : i32 to index
    %c0_10 = arith.constant 0 : index
    %10 = vector.load %arg10[%9, %c0_10] : memref<32x8xf32, #tpu.memory_space<vmem>>, vector<8x8xf32>
    %c0_11 = arith.constant 0 : index
    %11 = arith.index_cast %8 : i32 to index
    %c0_12 = arith.constant 0 : index
    %12 = vector.load %arg3[%c0_11, %11, %c0_12] : memref<1x32x128xf32, #tpu.memory_space<vmem>>, vector<1x8x128xf32>
    %13 = vector.shape_cast %12 : vector<1x8x128xf32> to vector<8x128xf32>
    %14 = arith.index_cast %8 : i32 to index
    %c0_13 = arith.constant 0 : index
    %15 = vector.load %arg7[%14, %c0_13] : memref<32x1xf32, #tpu.memory_space<vmem>>, vector<8x1xf32>
    %16 = tpu.transpose %10, [1, 0] : vector<8x8xf32> -> vector<8x8xf32>
    %17 = vector.shape_cast %16 : vector<8x8xf32> to vector<8x8x1xf32>
    %18 = vector.shape_cast %13 : vector<8x128xf32> to vector<1x8x128xf32>
    %19 = vector.broadcast %17 : vector<8x8x1xf32> to vector<8x8x128xf32>
    %20 = vector.broadcast %18 : vector<1x8x128xf32> to vector<8x8x128xf32>
    %21 = arith.addf %19, %20 : vector<8x8x128xf32>
    %c0_14 = arith.constant 0 : index
    %c0_15 = arith.constant 0 : index
    %c0_16 = arith.constant 0 : index
    %22 = vector.load %arg11[%c0_14, %c0_15, %c0_16] : memref<8x8x128xf32, #tpu.memory_space<vmem>>, vector<8x8x128xf32>
    %cst_17 = arith.constant 0.000000e+00 : f32
    %23 = vector.broadcast %cst_17 : f32 to vector<8x8x128xf32>
    %24 = arith.maximumf %21, %23 : vector<8x8x128xf32>
    %25 = vector.shape_cast %15 : vector<8x1xf32> to vector<1x8x1xf32>
    %26 = vector.broadcast %25 : vector<1x8x1xf32> to vector<8x8x128xf32>
    %27 = arith.mulf %24, %26 : vector<8x8x128xf32>
    %28 = arith.addf %22, %27 : vector<8x8x128xf32>
    %c0_18 = arith.constant 0 : index
    %c0_19 = arith.constant 0 : index
    %c0_20 = arith.constant 0 : index
    %29 = vector.load %arg11[%c0_18, %c0_19, %c0_20] : memref<8x8x128xf32, #tpu.memory_space<vmem>>, vector<8x8x128xf32>
    tpu.vector_store %arg11[%c0_18, %c0_19, %c0_20], %28 {strides = array<i32>} : memref<8x8x128xf32, #tpu.memory_space<vmem>>, vector<8x8x128xf32>,
    %c1_i32 = arith.constant 1 : i32
    %c8_i32_21 = arith.constant 8 : i32
    %30 = arith.muli %c1_i32, %c8_i32_21 : i32
    %31 = tpu.assume_multiple %30, 8 : i32
    %32 = arith.index_cast %31 : i32 to index
    %c0_22 = arith.constant 0 : index
    %33 = vector.load %arg10[%32, %c0_22] : memref<32x8xf32, #tpu.memory_space<vmem>>, vector<8x8xf32>
    %c0_23 = arith.constant 0 : index
    %34 = arith.index_cast %31 : i32 to index
    %c0_24 = arith.constant 0 : index
    %35 = vector.load %arg3[%c0_23, %34, %c0_24] : memref<1x32x128xf32, #tpu.memory_space<vmem>>, vector<1x8x128xf32>
    %36 = vector.shape_cast %35 : vector<1x8x128xf32> to vector<8x128xf32>
    %37 = arith.index_cast %31 : i32 to index
    %c0_25 = arith.constant 0 : index
    %38 = vector.load %arg7[%37, %c0_25] : memref<32x1xf32, #tpu.memory_space<vmem>>, vector<8x1xf32>
    %39 = tpu.transpose %33, [1, 0] : vector<8x8xf32> -> vector<8x8xf32>
    %40 = vector.shape_cast %39 : vector<8x8xf32> to vector<8x8x1xf32>
    %41 = vector.shape_cast %36 : vector<8x128xf32> to vector<1x8x128xf32>
    %42 = vector.broadcast %40 : vector<8x8x1xf32> to vector<8x8x128xf32>
    %43 = vector.broadcast %41 : vector<1x8x128xf32> to vector<8x8x128xf32>
    %44 = arith.addf %42, %43 : vector<8x8x128xf32>
    %c0_26 = arith.constant 0 : index
    %c0_27 = arith.constant 0 : index
    %c0_28 = arith.constant 0 : index
    %45 = vector.load %arg11[%c0_26, %c0_27, %c0_28] : memref<8x8x128xf32, #tpu.memory_space<vmem>>, vector<8x8x128xf32>
    %cst_29 = arith.constant 0.000000e+00 : f32
    %46 = vector.broadcast %cst_29 : f32 to vector<8x8x128xf32>
    %47 = arith.maximumf %44, %46 : vector<8x8x128xf32>
    %48 = vector.shape_cast %38 : vector<8x1xf32> to vector<1x8x1xf32>
    %49 = vector.broadcast %48 : vector<1x8x1xf32> to vector<8x8x128xf32>
    %50 = arith.mulf %47, %49 : vector<8x8x128xf32>
    %51 = arith.addf %45, %50 : vector<8x8x128xf32>
    %c0_30 = arith.constant 0 : index
    %c0_31 = arith.constant 0 : index
    %c0_32 = arith.constant 0 : index
    %52 = vector.load %arg11[%c0_30, %c0_31, %c0_32] : memref<8x8x128xf32, #tpu.memory_space<vmem>>, vector<8x8x128xf32>
    tpu.vector_store %arg11[%c0_30, %c0_31, %c0_32], %51 {strides = array<i32>} : memref<8x8x128xf32, #tpu.memory_space<vmem>>, vector<8x8x128xf32>,
    %c2_i32 = arith.constant 2 : i32
    %c8_i32_33 = arith.constant 8 : i32
    %53 = arith.muli %c2_i32, %c8_i32_33 : i32
    %54 = tpu.assume_multiple %53, 8 : i32
    %55 = arith.index_cast %54 : i32 to index
    %c0_34 = arith.constant 0 : index
    %56 = vector.load %arg10[%55, %c0_34] : memref<32x8xf32, #tpu.memory_space<vmem>>, vector<8x8xf32>
    %c0_35 = arith.constant 0 : index
    %57 = arith.index_cast %54 : i32 to index
    %c0_36 = arith.constant 0 : index
    %58 = vector.load %arg3[%c0_35, %57, %c0_36] : memref<1x32x128xf32, #tpu.memory_space<vmem>>, vector<1x8x128xf32>
    %59 = vector.shape_cast %58 : vector<1x8x128xf32> to vector<8x128xf32>
    %60 = arith.index_cast %54 : i32 to index
    %c0_37 = arith.constant 0 : index
    %61 = vector.load %arg7[%60, %c0_37] : memref<32x1xf32, #tpu.memory_space<vmem>>, vector<8x1xf32>
    %62 = tpu.transpose %56, [1, 0] : vector<8x8xf32> -> vector<8x8xf32>
    %63 = vector.shape_cast %62 : vector<8x8xf32> to vector<8x8x1xf32>
    %64 = vector.shape_cast %59 : vector<8x128xf32> to vector<1x8x128xf32>
    %65 = vector.broadcast %63 : vector<8x8x1xf32> to vector<8x8x128xf32>
    %66 = vector.broadcast %64 : vector<1x8x128xf32> to vector<8x8x128xf32>
    %67 = arith.addf %65, %66 : vector<8x8x128xf32>
    %c0_38 = arith.constant 0 : index
    %c0_39 = arith.constant 0 : index
    %c0_40 = arith.constant 0 : index
    %68 = vector.load %arg11[%c0_38, %c0_39, %c0_40] : memref<8x8x128xf32, #tpu.memory_space<vmem>>, vector<8x8x128xf32>
    %cst_41 = arith.constant 0.000000e+00 : f32
    %69 = vector.broadcast %cst_41 : f32 to vector<8x8x128xf32>
    %70 = arith.maximumf %67, %69 : vector<8x8x128xf32>
    %71 = vector.shape_cast %61 : vector<8x1xf32> to vector<1x8x1xf32>
    %72 = vector.broadcast %71 : vector<1x8x1xf32> to vector<8x8x128xf32>
    %73 = arith.mulf %70, %72 : vector<8x8x128xf32>
    %74 = arith.addf %68, %73 : vector<8x8x128xf32>
    %c0_42 = arith.constant 0 : index
    %c0_43 = arith.constant 0 : index
    %c0_44 = arith.constant 0 : index
    %75 = vector.load %arg11[%c0_42, %c0_43, %c0_44] : memref<8x8x128xf32, #tpu.memory_space<vmem>>, vector<8x8x128xf32>
    tpu.vector_store %arg11[%c0_42, %c0_43, %c0_44], %74 {strides = array<i32>} : memref<8x8x128xf32, #tpu.memory_space<vmem>>, vector<8x8x128xf32>,
    %c3_i32 = arith.constant 3 : i32
    %c8_i32_45 = arith.constant 8 : i32
    %76 = arith.muli %c3_i32, %c8_i32_45 : i32
    %77 = tpu.assume_multiple %76, 8 : i32
    %78 = arith.index_cast %77 : i32 to index
    %c0_46 = arith.constant 0 : index
    %79 = vector.load %arg10[%78, %c0_46] : memref<32x8xf32, #tpu.memory_space<vmem>>, vector<8x8xf32>
    %c0_47 = arith.constant 0 : index
    %80 = arith.index_cast %77 : i32 to index
    %c0_48 = arith.constant 0 : index
    %81 = vector.load %arg3[%c0_47, %80, %c0_48] : memref<1x32x128xf32, #tpu.memory_space<vmem>>, vector<1x8x128xf32>
    %82 = vector.shape_cast %81 : vector<1x8x128xf32> to vector<8x128xf32>
    %83 = arith.index_cast %77 : i32 to index
    %c0_49 = arith.constant 0 : index
    %84 = vector.load %arg7[%83, %c0_49] : memref<32x1xf32, #tpu.memory_space<vmem>>, vector<8x1xf32>
    %85 = tpu.transpose %79, [1, 0] : vector<8x8xf32> -> vector<8x8xf32>
    %86 = vector.shape_cast %85 : vector<8x8xf32> to vector<8x8x1xf32>
    %87 = vector.shape_cast %82 : vector<8x128xf32> to vector<1x8x128xf32>
    %88 = vector.broadcast %86 : vector<8x8x1xf32> to vector<8x8x128xf32>
    %89 = vector.broadcast %87 : vector<1x8x128xf32> to vector<8x8x128xf32>
    %90 = arith.addf %88, %89 : vector<8x8x128xf32>
    %c0_50 = arith.constant 0 : index
    %c0_51 = arith.constant 0 : index
    %c0_52 = arith.constant 0 : index
    %91 = vector.load %arg11[%c0_50, %c0_51, %c0_52] : memref<8x8x128xf32, #tpu.memory_space<vmem>>, vector<8x8x128xf32>
    %cst_53 = arith.constant 0.000000e+00 : f32
    %92 = vector.broadcast %cst_53 : f32 to vector<8x8x128xf32>
    %93 = arith.maximumf %90, %92 : vector<8x8x128xf32>
    %94 = vector.shape_cast %84 : vector<8x1xf32> to vector<1x8x1xf32>
    %95 = vector.broadcast %94 : vector<1x8x1xf32> to vector<8x8x128xf32>
    %96 = arith.mulf %93, %95 : vector<8x8x128xf32>
    %97 = arith.addf %91, %96 : vector<8x8x128xf32>
    %c0_54 = arith.constant 0 : index
    %c0_55 = arith.constant 0 : index
    %c0_56 = arith.constant 0 : index
    %98 = vector.load %arg11[%c0_54, %c0_55, %c0_56] : memref<8x8x128xf32, #tpu.memory_space<vmem>>, vector<8x8x128xf32>
    tpu.vector_store %arg11[%c0_54, %c0_55, %c0_56], %97 {strides = array<i32>} : memref<8x8x128xf32, #tpu.memory_space<vmem>>, vector<8x8x128xf32>,
    %c4_i32 = arith.constant 4 : i32
    %c0_57 = arith.constant 0 : index
    %c0_58 = arith.constant 0 : index
    %c0_59 = arith.constant 0 : index
    %99 = vector.load %arg11[%c0_57, %c0_58, %c0_59] : memref<8x8x128xf32, #tpu.memory_space<vmem>>, vector<8x8x128xf32>
    %cst_60 = arith.constant dense<0.000000e+00> : vector<8x128xf32>
    %100 = vector.multi_reduction <add>, %99, %cst_60 [1] : vector<8x8x128xf32> to vector<8x128xf32>
    %c0_61 = arith.constant 0 : index
    %c0_62 = arith.constant 0 : index
    %c0_63 = arith.constant 0 : index
    %101 = vector.load %arg4[%c0_61, %c0_62, %c0_63] : memref<1x1x128xf32, #tpu.memory_space<vmem>>, vector<1x1x128xf32>
    %102 = vector.shape_cast %101 : vector<1x1x128xf32> to vector<1x128xf32>
    %103 = vector.broadcast %102 : vector<1x128xf32> to vector<8x128xf32>
    %104 = arith.addf %100, %103 : vector<8x128xf32>
    %cst_64 = arith.constant dense<0xFF800000> : vector<8xf32>
    %105 = vector.multi_reduction <maximumf>, %104, %cst_64 [1] : vector<8x128xf32> to vector<8xf32>
    %106 = vector.shape_cast %105 : vector<8xf32> to vector<8x1xf32>
    %107 = vector.broadcast %106 : vector<8x1xf32> to vector<8x128xf32>
    %108 = arith.subf %104, %107 : vector<8x128xf32>
    %109 = math.exp %108 : vector<8x128xf32>
    %cst_65 = arith.constant dense<0.000000e+00> : vector<8xf32>
    %110 = vector.multi_reduction <add>, %109, %cst_65 [1] : vector<8x128xf32> to vector<8xf32>
    %111 = vector.shape_cast %110 : vector<8xf32> to vector<8x1xf32>
    %112 = tpu.reciprocal %111 : vector<8x1xf32> -> vector<8x1xf32>
    %113 = vector.broadcast %112 : vector<8x1xf32> to vector<8x128xf32>
    %114 = arith.mulf %109, %113 : vector<8x128xf32>
    %c0_66 = arith.constant 0 : index
    %c0_67 = arith.constant 0 : index
    %c0_68 = arith.constant 0 : index
    %115 = vector.load %arg5[%c0_66, %c0_67, %c0_68] : memref<1x128x32xf32, #tpu.memory_space<vmem>>, vector<1x128x32xf32>
    %116 = vector.shape_cast %115 : vector<1x128x32xf32> to vector<128x32xf32>
    %cst_69 = arith.constant dense<0.000000e+00> : vector<8x32xf32>
    %117 = tpu.matmul %114, %116, %cst_69 {dimension_numbers = #tpu.dot_dimension_numbers<[1], [0], [0], [1], [0, 0, 1, 1], [], []>} : vector<8x128xf32>, vector<128x32xf32>, vector<8x32xf32> -> vector<8x32xf32>
    %c0_70 = arith.constant 0 : index
    %c0_71 = arith.constant 0 : index
    %c0_72 = arith.constant 0 : index
    %118 = vector.load %arg8[%c0_70, %c0_71, %c0_72] : memref<1x8x32xf32, #tpu.memory_space<vmem>>, vector<1x8x32xf32>
    %119 = vector.shape_cast %118 : vector<1x8x32xf32> to vector<8x32xf32>
    %120 = vector.shape_cast %117 : vector<8x32xf32> to vector<1x8x32xf32>
    tpu.vector_store %arg8[%c0_70, %c0_71, %c0_72], %120 {strides = array<i32>} : memref<1x8x32xf32, #tpu.memory_space<vmem>>, vector<1x8x32xf32>,
    %c0_73 = arith.constant 0 : index
    %c0_74 = arith.constant 0 : index
    %c0_75 = arith.constant 0 : index
    %121 = vector.load %arg9[%c0_73, %c0_74, %c0_75] : memref<1x8x128xf32, #tpu.memory_space<vmem>>, vector<1x8x128xf32>
    %122 = vector.shape_cast %121 : vector<1x8x128xf32> to vector<8x128xf32>
    %123 = vector.shape_cast %114 : vector<8x128xf32> to vector<1x8x128xf32>
    tpu.vector_store %arg9[%c0_73, %c0_74, %c0_75], %123 {strides = array<i32>} : memref<1x8x128xf32, #tpu.memory_space<vmem>>, vector<1x8x128xf32>,
    return
  }
  func.func @transform_0(%arg0: i32, %arg1: i32) -> (i32, i32, i32) {
    %c0_i32 = arith.constant 0 : i32
    %c0_i32_0 = arith.constant 0 : i32
    return %arg0, %arg1, %c0_i32 : i32, i32, i32
  }
  func.func @transform_1(%arg0: i32, %arg1: i32) -> (i32, i32, i32) {
    %c0_i32 = arith.constant 0 : i32
    %c0_i32_0 = arith.constant 0 : i32
    %c0_i32_1 = arith.constant 0 : i32
    return %arg0, %c0_i32, %c0_i32_0 : i32, i32, i32
  }
  func.func @transform_2(%arg0: i32, %arg1: i32) -> (i32, i32, i32) {
    %c0_i32 = arith.constant 0 : i32
    %c0_i32_0 = arith.constant 0 : i32
    %c0_i32_1 = arith.constant 0 : i32
    return %arg0, %c0_i32, %c0_i32_0 : i32, i32, i32
  }
  func.func @transform_3(%arg0: i32, %arg1: i32) -> (i32, i32, i32) {
    %c0_i32 = arith.constant 0 : i32
    %c0_i32_0 = arith.constant 0 : i32
    %c0_i32_1 = arith.constant 0 : i32
    return %arg0, %c0_i32, %c0_i32_0 : i32, i32, i32
  }
  func.func @transform_4(%arg0: i32, %arg1: i32) -> (i32, i32) {
    %c0_i32 = arith.constant 0 : i32
    %c0_i32_0 = arith.constant 0 : i32
    %c0_i32_1 = arith.constant 0 : i32
    return %c0_i32, %c0_i32_0 : i32, i32
  }
  func.func @transform_5(%arg0: i32, %arg1: i32) -> (i32, i32) {
    %c0_i32 = arith.constant 0 : i32
    %c0_i32_0 = arith.constant 0 : i32
    %c0_i32_1 = arith.constant 0 : i32
    return %c0_i32, %c0_i32_0 : i32, i32
  }
  func.func @transform_6(%arg0: i32, %arg1: i32) -> (i32, i32, i32) {
    %c0_i32 = arith.constant 0 : i32
    %c0_i32_0 = arith.constant 0 : i32
    return %arg0, %arg1, %c0_i32 : i32, i32, i32
  }
  func.func @transform_7(%arg0: i32, %arg1: i32) -> (i32, i32, i32) {
    %c0_i32 = arith.constant 0 : i32
    %c0_i32_0 = arith.constant 0 : i32
    return %arg0, %arg1, %c0_i32 : i32, i32, i32
  }
}

</mosaic_0001>

<llo_original>
// kernel: attention_mlp.1
$region0: #{attention_mlp.1}
  #allocation0 [shape = 'u32[]', space=smem, size = 0x4, offset = 0x4, fixed_abs, tag = 'smem constant byte address 0x4 - core index']
  #allocation1 [shape = 'u32[144,128]{1,0:T(1,128)}', space=vmem, size = 0x12000, scoped, tag = 'internal scratch']
  #allocation2 [shape = 'f32[32,8]{1,0:T(8,128)}', space=vmem, size = 0x4000, scoped, tag = 'scratch operand']
  #allocation3 [shape = 'f32[8,8,128]{2,1,0:T(8,128)}', space=vmem, size = 0x8000, scoped, tag = 'scratch operand']
  %s0 = inlined_call_operand.vmem [shape: f32[2,8,32], index: 0, kind: input, shape index: {}]
  %s1 = inlined_call_operand.vmem [shape: f32[2,32,128], index: 1, kind: input, shape index: {}]
  %s2 = inlined_call_operand.vmem [shape: f32[2,1,128], index: 2, kind: input, shape index: {}]
  %s3 = inlined_call_operand.vmem [shape: f32[2,128,32], index: 3, kind: input, shape index: {}]
  %s4 = inlined_call_operand.vmem [shape: f32[32,32], index: 4, kind: input, shape index: {}]
  %s5 = inlined_call_operand.vmem [shape: f32[32,1], index: 5, kind: input, shape index: {}]
  %s6 = inlined_call_operand.hbm [shape: f32[2,8,32], index: 6, kind: output, shape index: {0}]
  %s7 = inlined_call_operand.hbm [shape: f32[2,8,128], index: 7, kind: output, shape index: {1}]
  %8 = xla_tuple %s6, %s7
  %s9 = sld [smem:[#allocation0]]
  $region65: #{attention_mlp.1} parent=0
    _
  %s11 = ssub.s32 1, %s9
  %s12 = scalar_select 0, %s11, %s9
  $region1: #{attention_mlp.1} parent=0
    #allocation4 [shape = 'u8[8192]{0}', space=vmem, size = 0x2000, scoped, tag = 'output window, operand 0']
    #allocation5 [shape = 's32[2]{0}', space=sflag, size = 0x8, scoped, tag = 'scoped memory for attention_mlp.1']
    #allocation6 [shape = 'u8[8192]{0}', space=vmem, size = 0x2000, scoped, tag = 'output window, operand 1']
    #allocation7 [shape = 's32[2]{0}', space=sflag, size = 0x8, scoped, tag = 'scoped memory for attention_mlp.1']
    %13 = vsyncpa [#allocation5], 0
    %s14 = scalar_lea.sflag [#allocation5], 1
    %15 = vsyncpa %s14, 0
    %16 = vsyncpa [#allocation7], 0
    %s17 = scalar_lea.sflag [#allocation7], 1
    %18 = vsyncpa %s17, 0
    loop: start=0, step=1, limit=4
    $region2: #{attention_mlp.1} parent=1 // loop_pre_header
      _
    $region3: #{attention_mlp.1} parent=1 // loop_header
      %s20 = sphi 0, %s24
      %p21 = scmp.ge.s32.totalorder %s20, 4
      %s27 = sphi 0, %s39
      %s28 = sphi 0, %s35
      %s29 = sphi 0, %s27
      %s30 = sphi 0, %s28
      %s31 = sphi 0, %s29
      %s32 = sphi 0, %s30
      %s44 = sphi 0, %s46
      %s47 = sphi 0, %s44
      %s48 = sphi 0, %s47
      %s64 = sphi 0, %s48
      %s70 = sphi 0, %s72
      %s73 = sphi 0, %s70
      %s74 = sphi 0, %s73
      %s90 = sphi 0, %s74
      %s96 = sphi 0, %s98
      %s99 = sphi 0, %s96
      %s100 = sphi 0, %s99
      %s116 = sphi 0, %s100
      %s122 = sphi 0, %s124
      %s125 = sphi 0, %s122
      %s126 = sphi 0, %s125
      %s142 = sphi 0, %s126
      %s146 = sphi 0, %s146
      %s148 = sphi 0, %s146
      %s149 = sphi 0, %s148
      %s163 = sphi 0, %s149
      %s167 = sphi 0, %s167
      %s169 = sphi 0, %s167
      %s170 = sphi 0, %s169
      %s184 = sphi 0, %s170
      %s192 = sphi 0, %s194
      %s195 = sphi 0, %s192
      %s196 = sphi 0, %s195
      %s212 = sphi 0, %s196
      %s220 = sphi 0, %s222
      %s223 = sphi 0, %s220
      %s224 = sphi 0, %s223
      %s240 = sphi 0, %s224
    $region4: #{attention_mlp.1} parent=1 // loop_header_branch
      %23 = sbr.rel (%p21) target = $region8
    $region5: #{attention_mlp.1} parent=1 // loop_body
      %s25 = ssub.s32 %s20, 1
      %s26 = ssub.s32 %s20, 2
      %s33 = sadd.s32 1, %s28
      %p34 = scmp.ge.s32.totalorder %s33, 1
      %s35 = scalar_select %p34, 0, %s33
      %s36 = sadd.s32 1, %s27
      %s37 = scalar_select %p34, %s36, %s27
      %p38 = scmp.ge.s32.totalorder %s37, 2
      %s39 = scalar_select %p38, 0, %s37
      %s40 = ssub.s32 %s27, %s39
      %s41 = ssub.s32 %s28, %s35
      %s42 = sor.u32 %s40, %s41
      %p43 = scmp.eq.s32.totalorder %s42, 0
      %s45 = sadd.s32 %s44, 1
      %s46 = scalar_select %p43, %s44, %s45
      %p49 = pneg %p43
      %p50 = scmp.eq.s32.totalorder %s20, 1
      %p51 = por %p49, %p50
      %p52 = scmp.ne.s32.totalorder %s44, %s47
      %p53 = scmp.eq.s32.totalorder %s20, 0
      %p54 = por %p52, %p53
      %p55 = scmp.ne.s32.totalorder %s44, %s47
      %p56 = scmp.eq.s32.totalorder %s25, 1
      %p57 = por %p55, %p56
      %p58 = scmp.ne.s32.totalorder %s47, %s48
      %p59 = scmp.eq.s32.totalorder %s25, 0
      %p60 = por %p58, %p59
      %p61 = scmp.ne.s32.totalorder %s47, %s48
      %p62 = scmp.eq.s32.totalorder %s26, 1
      %p63 = por %p61, %p62
      %p65 = scmp.ne.s32.totalorder %s48, %s64
      %p66 = scmp.eq.s32.totalorder %s26, 0
      %p67 = por %p65, %p66
      %s68 = ssub.s32 %s27, %s39
      %p69 = scmp.eq.s32.totalorder %s68, 0
      %s71 = sadd.s32 %s70, 1
      %s72 = scalar_select %p69, %s70, %s71
      %p75 = pneg %p69
      %p76 = scmp.eq.s32.totalorder %s20, 1
      %p77 = por %p75, %p76
      %p78 = scmp.ne.s32.totalorder %s70, %s73
      %p79 = scmp.eq.s32.totalorder %s20, 0
      %p80 = por %p78, %p79
      %p81 = scmp.ne.s32.totalorder %s70, %s73
      %p82 = scmp.eq.s32.totalorder %s25, 1
      %p83 = por %p81, %p82
      %p84 = scmp.ne.s32.totalorder %s73, %s74
      %p85 = scmp.eq.s32.totalorder %s25, 0
      %p86 = por %p84, %p85
      %p87 = scmp.ne.s32.totalorder %s73, %s74
      %p88 = scmp.eq.s32.totalorder %s26, 1
      %p89 = por %p87, %p88
      %p91 = scmp.ne.s32.totalorder %s74, %s90
      %p92 = scmp.eq.s32.totalorder %s26, 0
      %p93 = por %p91, %p92
      %s94 = ssub.s32 %s27, %s39
      %p95 = scmp.eq.s32.totalorder %s94, 0
      %s97 = sadd.s32 %s96, 1
      %s98 = scalar_select %p95, %s96, %s97
      %p101 = pneg %p95
      %p102 = scmp.eq.s32.totalorder %s20, 1
      %p103 = por %p101, %p102
      %p104 = scmp.ne.s32.totalorder %s96, %s99
      %p105 = scmp.eq.s32.totalorder %s20, 0
      %p106 = por %p104, %p105
      %p107 = scmp.ne.s32.totalorder %s96, %s99
      %p108 = scmp.eq.s32.totalorder %s25, 1
      %p109 = por %p107, %p108
      %p110 = scmp.ne.s32.totalorder %s99, %s100
      %p111 = scmp.eq.s32.totalorder %s25, 0
      %p112 = por %p110, %p111
      %p113 = scmp.ne.s32.totalorder %s99, %s100
      %p114 = scmp.eq.s32.totalorder %s26, 1
      %p115 = por %p113, %p114
      %p117 = scmp.ne.s32.totalorder %s100, %s116
      %p118 = scmp.eq.s32.totalorder %s26, 0
      %p119 = por %p117, %p118
      %s120 = ssub.s32 %s27, %s39
      %p121 = scmp.eq.s32.totalorder %s120, 0
      %s123 = sadd.s32 %s122, 1
      %s124 = scalar_select %p121, %s122, %s123
      %p127 = pneg %p121
      %p128 = scmp.eq.s32.totalorder %s20, 1
      %p129 = por %p127, %p128
      %p130 = scmp.ne.s32.totalorder %s122, %s125
      %p131 = scmp.eq.s32.totalorder %s20, 0
      %p132 = por %p130, %p131
      %p133 = scmp.ne.s32.totalorder %s122, %s125
      %p134 = scmp.eq.s32.totalorder %s25, 1
      %p135 = por %p133, %p134
      %p136 = scmp.ne.s32.totalorder %s125, %s126
      %p137 = scmp.eq.s32.totalorder %s25, 0
      %p138 = por %p136, %p137
      %p139 = scmp.ne.s32.totalorder %s125, %s126
      %p140 = scmp.eq.s32.totalorder %s26, 1
      %p141 = por %p139, %p140
      %p143 = scmp.ne.s32.totalorder %s126, %s142
      %p144 = scmp.eq.s32.totalorder %s26, 0
      %p145 = por %p143, %p144
      %s147 = sadd.s32 %s146, 1
      %p150 = scmp.eq.s32.totalorder %s20, 1
      %p151 = scmp.ne.s32.totalorder %s146, %s148
      %p152 = scmp.eq.s32.totalorder %s20, 0
      %p153 = por %p151, %p152
      %p154 = scmp.ne.s32.totalorder %s146, %s148
      %p155 = scmp.eq.s32.totalorder %s25, 1
      %p156 = por %p154, %p155
      %p157 = scmp.ne.s32.totalorder %s148, %s149
      %p158 = scmp.eq.s32.totalorder %s25, 0
      %p159 = por %p157, %p158
      %p160 = scmp.ne.s32.totalorder %s148, %s149
      %p161 = scmp.eq.s32.totalorder %s26, 1
      %p162 = por %p160, %p161
      %p164 = scmp.ne.s32.totalorder %s149, %s163
      %p165 = scmp.eq.s32.totalorder %s26, 0
      %p166 = por %p164, %p165
      %s168 = sadd.s32 %s167, 1
      %p171 = scmp.eq.s32.totalorder %s20, 1
      %p172 = scmp.ne.s32.totalorder %s167, %s169
      %p173 = scmp.eq.s32.totalorder %s20, 0
      %p174 = por %p172, %p173
      %p175 = scmp.ne.s32.totalorder %s167, %s169
      %p176 = scmp.eq.s32.totalorder %s25, 1
      %p177 = por %p175, %p176
      %p178 = scmp.ne.s32.totalorder %s169, %s170
      %p179 = scmp.eq.s32.totalorder %s25, 0
      %p180 = por %p178, %p179
      %p181 = scmp.ne.s32.totalorder %s169, %s170
      %p182 = scmp.eq.s32.totalorder %s26, 1
      %p183 = por %p181, %p182
      %p185 = scmp.ne.s32.totalorder %s170, %s184
      %p186 = scmp.eq.s32.totalorder %s26, 0
      %p187 = por %p185, %p186
      %s188 = ssub.s32 %s27, %s39
      %s189 = ssub.s32 %s28, %s35
      %s190 = sor.u32 %s188, %s189
      %p191 = scmp.eq.s32.totalorder %s190, 0
      %s193 = sadd.s32 %s192, 1
      %s194 = scalar_select %p191, %s192, %s193
      %p197 = pneg %p191
      %p198 = scmp.eq.s32.totalorder %s20, 1
      %p199 = por %p197, %p198
      %p200 = scmp.ne.s32.totalorder %s192, %s195
      %p201 = scmp.eq.s32.totalorder %s20, 0
      %p202 = por %p200, %p201
      %p203 = scmp.ne.s32.totalorder %s192, %s195
      %p204 = scmp.eq.s32.totalorder %s25, 1
      %p205 = por %p203, %p204
      %p206 = scmp.ne.s32.totalorder %s195, %s196
      %p207 = scmp.eq.s32.totalorder %s25, 0
      %p208 = por %p206, %p207
      %p209 = scmp.ne.s32.totalorder %s195, %s196
      %p210 = scmp.eq.s32.totalorder %s26, 1
      %p211 = por %p209, %p210
      %p213 = scmp.ne.s32.totalorder %s196, %s212
      %p214 = scmp.eq.s32.totalorder %s26, 0
      %p215 = por %p213, %p214
      %s216 = ssub.s32 %s27, %s39
      %s217 = ssub.s32 %s28, %s35
      %s218 = sor.u32 %s216, %s217
      %p219 = scmp.eq.s32.totalorder %s218, 0
      %s221 = sadd.s32 %s220, 1
      %s222 = scalar_select %p219, %s220, %s221
      %p225 = pneg %p219
      %p226 = scmp.eq.s32.totalorder %s20, 1
      %p227 = por %p225, %p226
      %p228 = scmp.ne.s32.totalorder %s220, %s223
      %p229 = scmp.eq.s32.totalorder %s20, 0
      %p230 = por %p228, %p229
      %p231 = scmp.ne.s32.totalorder %s220, %s223
      %p232 = scmp.eq.s32.totalorder %s25, 1
      %p233 = por %p231, %p232
      %p234 = scmp.ne.s32.totalorder %s223, %s224
      %p235 = scmp.eq.s32.totalorder %s25, 0
      %p236 = por %p234, %p235
      %p237 = scmp.ne.s32.totalorder %s223, %s224
      %p238 = scmp.eq.s32.totalorder %s26, 1
      %p239 = por %p237, %p238
      %p241 = scmp.ne.s32.totalorder %s224, %s240
      %p242 = scmp.eq.s32.totalorder %s26, 0
      %p243 = por %p241, %p242
      %p244 = scmp.le.s32.totalorder 1, %s20
      %p245 = scmp.lt.s32.totalorder %s20, 3
      %p246 = pnand %p244, %p245
      %p247 = pneg %p246
      // Predicated region
      $region9: #{attention_mlp.1} parent=5 // pred_check
        _
      $region10: #{attention_mlp.1} parent=5 // pred_check_branch
        %249 = sbr.rel (%p246) target = $region12
      $region11: #{attention_mlp.1} parent=5 // pred_region
        %s250 = ssub.s32 %s20, 1
        // Predicated region
        $region13: #{attention_mlp.1} parent=11 // pred_check
          %p251 = pneg %p159
        $region14: #{attention_mlp.1} parent=11 // pred_check_branch
          %253 = sbr.rel (%p251) target = $region16
        $region15: #{attention_mlp.1} parent=11 // pred_region
          _
        $region16: #{attention_mlp.1} parent=11 // pred_fallthru
          _
        // Predicated region
        $region17: #{attention_mlp.1} parent=11 // pred_check
          %p254 = pneg %p180
        $region18: #{attention_mlp.1} parent=11 // pred_check_branch
          %256 = sbr.rel (%p254) target = $region20
        $region19: #{attention_mlp.1} parent=11 // pred_region
          _
        $region20: #{attention_mlp.1} parent=11 // pred_fallthru
          _
      $region12: #{attention_mlp.1} parent=5 // pred_fallthru
        _
      %p257 = scmp.lt.s32.totalorder %s20, 2
      // Predicated region
      $region21: #{attention_mlp.1} parent=5 // pred_check
        %p258 = pneg %p257
      $region22: #{attention_mlp.1} parent=5 // pred_check_branch
        %260 = sbr.rel (%p258) target = $region24
      $region23: #{attention_mlp.1} parent=5 // pred_region
        // Predicated region
        $region25: #{attention_mlp.1} parent=23 // pred_check
          %p261 = pneg %p54
        $region26: #{attention_mlp.1} parent=23 // pred_check_branch
          %263 = sbr.rel (%p261) target = $region28
        $region27: #{attention_mlp.1} parent=23 // pred_region
          %p264 = scmp.lt.s32.totalorder %s27, 1
          %s265 = scalar_select %p264, %s27, 1
          %p266 = scmp.lt.s32.totalorder %s28, 0
          %s267 = scalar_select %p266, %s28, 0
          %s268 = sadd.s32 %s267, %s265
          %s269 = smul.addr %s268, 8
          %s270 = scalar_lea.vmem %s0, %s269
        $region28: #{attention_mlp.1} parent=23 // pred_fallthru
          _
        // Predicated region
        $region29: #{attention_mlp.1} parent=23 // pred_check
          %p271 = pneg %p80
        $region30: #{attention_mlp.1} parent=23 // pred_check_branch
          %273 = sbr.rel (%p271) target = $region32
        $region31: #{attention_mlp.1} parent=23 // pred_region
          %p274 = scmp.lt.s32.totalorder %s27, 1
          %s275 = scalar_select %p274, %s27, 1
          %s276 = smul.addr %s275, 4
          %s277 = smul.addr %s276, 8
          %s278 = scalar_lea.vmem %s1, %s277
        $region32: #{attention_mlp.1} parent=23 // pred_fallthru
          _
        // Predicated region
        $region33: #{attention_mlp.1} parent=23 // pred_check
          %p279 = pneg %p106
        $region34: #{attention_mlp.1} parent=23 // pred_check_branch
          %281 = sbr.rel (%p279) target = $region36
        $region35: #{attention_mlp.1} parent=23 // pred_region
          %p282 = scmp.lt.s32.totalorder %s27, 1
          %s283 = scalar_select %p282, %s27, 1
          %s284 = scalar_lea.vmem %s2, %s283
        $region36: #{attention_mlp.1} parent=23 // pred_fallthru
          _
        // Predicated region
        $region37: #{attention_mlp.1} parent=23 // pred_check
          %p285 = pneg %p132
        $region38: #{attention_mlp.1} parent=23 // pred_check_branch
          %287 = sbr.rel (%p285) target = $region40
        $region39: #{attention_mlp.1} parent=23 // pred_region
          %p288 = scmp.lt.s32.totalorder %s27, 1
          %s289 = scalar_select %p288, %s27, 1
          %s290 = smul.addr %s289, 16
          %s291 = smul.addr %s290, 8
          %s292 = scalar_lea.vmem %s3, %s291
        $region40: #{attention_mlp.1} parent=23 // pred_fallthru
          _
      $region24: #{attention_mlp.1} parent=5 // pred_fallthru
        _
      %p293 = scmp.le.s32.totalorder 1, %s20
      %p294 = scmp.lt.s32.totalorder %s20, 3
      %p295 = pnand %p293, %p294
      %p296 = pneg %p295
      // Predicated region
      $region41: #{attention_mlp.1} parent=5 // pred_check
        _
      $region42: #{attention_mlp.1} parent=5 // pred_check_branch
        %298 = sbr.rel (%p295) target = $region44
      $region43: #{attention_mlp.1} parent=5 // pred_region
        %s299 = ssub.s32 %s20, 1
        %p300 = scmp.lt.s32.totalorder %s29, 1
        %s301 = scalar_select %p300, %s29, 1
        %p302 = scmp.lt.s32.totalorder %s30, 0
        %s303 = scalar_select %p302, %s30, 0
        %s304 = sadd.s32 %s303, %s301
        %s305 = smul.addr %s304, 8
        %s306 = scalar_lea.vmem %s0, %s305
        %p307 = pneg %p60
        %p308 = pneg %p57
        %p309 = scmp.lt.s32.totalorder %s29, 1
        %s310 = scalar_select %p309, %s29, 1
        %s311 = smul.addr %s310, 4
        %s312 = smul.addr %s311, 8
        %s313 = scalar_lea.vmem %s1, %s312
        %p314 = pneg %p86
        %p315 = pneg %p83
        %p316 = scmp.lt.s32.totalorder %s29, 1
        %s317 = scalar_select %p316, %s29, 1
        %s318 = scalar_lea.vmem %s2, %s317
        %p319 = pneg %p112
        %p320 = pneg %p109
        %p321 = scmp.lt.s32.totalorder %s29, 1
        %s322 = scalar_select %p321, %s29, 1
        %s323 = smul.addr %s322, 16
        %s324 = smul.addr %s323, 8
        %s325 = scalar_lea.vmem %s3, %s324
        %p326 = pneg %p138
        %p327 = pneg %p135
        %p328 = pneg %p159
        %p329 = pneg %p156
        %p330 = pneg %p180
        %p331 = pneg %p177
        %p332 = pneg %p208
        %p333 = pneg %p205
        %s334 = sand.u32 %s195, 1
        %s335 = scalar_lea.sflag [#allocation5], %s334
        %s336 = sand.u32 %s195, 1
        %s337 = smul.addr %s336, 8
        %s338 = scalar_lea.vmem [#allocation4], %s337
        %p339 = pneg %p236
        %p340 = pneg %p233
        %s341 = sand.u32 %s223, 1
        %s342 = scalar_lea.sflag [#allocation7], %s341
        %s343 = sand.u32 %s223, 1
        %s344 = smul.addr %s343, 8
        %s345 = scalar_lea.vmem [#allocation6], %s344
        %p346 = scmp.lt.s32.totalorder %s29, 1
        %s347 = scalar_select %p346, %s29, 1
        %p348 = scmp.lt.s32.totalorder %s30, 0
        %s349 = scalar_select %p348, %s30, 0
        %s350 = sadd.s32 %s349, %s347
        %s351 = smul.addr %s350, 8
        %s352 = scalar_lea.vmem %s0, %s351
        %p353 = scmp.lt.s32.totalorder %s29, 1
        %s354 = scalar_select %p353, %s29, 1
        %s355 = smul.addr %s354, 4
        %s356 = smul.addr %s355, 8
        %s357 = scalar_lea.vmem %s1, %s356
        %p358 = scmp.lt.s32.totalorder %s29, 1
        %s359 = scalar_select %p358, %s29, 1
        %s360 = scalar_lea.vmem %s2, %s359
        %p361 = scmp.lt.s32.totalorder %s29, 1
        %s362 = scalar_select %p361, %s29, 1
        %s363 = smul.addr %s362, 16
        %s364 = smul.addr %s363, 8
        %s365 = scalar_lea.vmem %s3, %s364
        %v366 = vld [vmem:[%s4] sm:$0xff]
        %v367 = vld [vmem:[%s4 + $0x8] sm:$0xff]
        %v368 = vld [vmem:[%s4 + $0x10] sm:$0xff]
        %v369 = vld [vmem:[%s4 + $0x18] sm:$0xff]
        %v370 = vld [vmem:[%s352] sm:$0xff]
        %vm371 = vcmask 261120
        %v373 = vsel %vm371, %v366, 0
        %v376 = vsel %vm371, %v367, 0
        %v379 = vsel %vm371, %v368, 0
        %v382 = vsel %vm371, %v369, 0
        %v385 = vsel %vm371, %v370, 0
        %387 = vmatprep.subr.mxu0 0.0
        %388 = vmatpush1.xpose.msra.mxu0 %v385
        %389 = vmatprep.subr.mxu0 0.0
        %390 = vmatpush1.xpose.msra.mxu0 0.0
        %391 = vmatprep.subr.mxu0 0.0
        %392 = vmatpush1.xpose.msra.mxu0 0.0
        %393 = vmatprep.subr.mxu0 0.0
        %394 = vmatpush1.xpose.msra.mxu0 0.0
        %395 = vmatprep.subr.mxu0 0.0
        %396 = vmatpush1.xpose.msra.mxu0 0.0
        %397 = vmatprep.subr.mxu0 0.0
        %398 = vmatpush1.xpose.msra.mxu0 0.0
        %399 = vmatprep.subr.mxu0 0.0
        %400 = vmatpush1.xpose.msra.mxu0 0.0
        %401 = vmatprep.subr.mxu0 0.0
        %402 = vmatpush1.xpose.msra.mxu0 0.0
        %403 = vmatprep.subr.mxu0 0.0
        %404 = vmatpush1.xpose.msra.mxu0 0.0
        %405 = vmatprep.subr.mxu0 0.0
        %406 = vmatpush1.xpose.msra.mxu0 0.0
        %407 = vmatprep.subr.mxu0 0.0
        %408 = vmatpush1.xpose.msra.mxu0 0.0
        %409 = vmatprep.subr.mxu0 0.0
        %410 = vmatpush1.xpose.msra.mxu0 0.0
        %411 = vmatprep.subr.mxu0 0.0
        %412 = vmatpush1.xpose.msra.mxu0 0.0
        %413 = vmatprep.subr.mxu0 0.0
        %414 = vmatpush1.xpose.msra.mxu0 0.0
        %415 = vmatprep.subr.mxu0 0.0
        %416 = vmatpush1.xpose.msra.mxu0 0.0
        %417 = vmatprep.subr.mxu0 0.0
        %418 = vmatpush1.xpose.msra.mxu0 0.0
        %419 = vmatprep.subr.mxu0 0.0
        %420 = vmatpush1.xpose.msra.mxu0 0.0
        %421 = vmatprep.subr.mxu0 0.0
        %422 = vmatpush1.xpose.msra.mxu0 0.0
        %423 = vmatprep.subr.mxu0 0.0
        %424 = vmatpush1.xpose.msra.mxu0 0.0
        %425 = vmatprep.subr.mxu0 0.0
        %426 = vmatpush1.xpose.msra.mxu0 0.0
        %427 = vmatprep.subr.mxu0 0.0
        %428 = vmatpush1.xpose.msra.mxu0 0.0
        %429 = vmatprep.subr.mxu0 0.0
        %430 = vmatpush1.xpose.msra.mxu0 0.0
        %431 = vmatprep.subr.mxu0 0.0
        %432 = vmatpush1.xpose.msra.mxu0 0.0
        %433 = vmatprep.subr.mxu0 0.0
        %434 = vmatpush1.xpose.msra.mxu0 0.0
        %435 = vmatprep.subr.mxu0 0.0
        %436 = vmatpush1.xpose.msra.mxu0 0.0
        %437 = vmatprep.subr.mxu0 0.0
        %438 = vmatpush1.xpose.msra.mxu0 0.0
        %439 = vmatprep.subr.mxu0 0.0
        %440 = vmatpush1.xpose.msra.mxu0 0.0
        %441 = vmatprep.subr.mxu0 0.0
        %442 = vmatpush1.xpose.msra.mxu0 0.0
        %443 = vmatprep.subr.mxu0 0.0
        %444 = vmatpush1.xpose.msra.mxu0 0.0
        %445 = vmatprep.subr.mxu0 0.0
        %446 = vmatpush1.xpose.msra.mxu0 0.0
        %447 = vmatprep.subr.mxu0 0.0
        %448 = vmatpush1.xpose.msra.mxu0 0.0
        %449 = vmatprep.subr.mxu0 0.0
        %450 = vmatpush1.xpose.msra.mxu0 0.0
        %451 = vmatprep.mubr.f32.mxu0 0.0
        %452 = vmatmul.mubr.f32.gmra.mrb[0].mxu0 %v373
        %v453 = vpop.f32.mrb[0].mxu0
        %v454 = vadd.f32 0.0, %v453
        %v455 = vpop.f32.mrb[0].mxu0
        %456 = vmatprep.mubr.f32.mxu0 0.0
        %457 = vmatmul.mubr.f32.gmra.mrb[0].mxu0 %v376
        %v458 = vpop.f32.mrb[0].mxu0
        %v459 = vadd.f32 0.0, %v458
        %v460 = vpop.f32.mrb[0].mxu0
        %461 = vmatprep.mubr.f32.mxu0 0.0
        %462 = vmatmul.mubr.f32.gmra.mrb[0].mxu0 %v379
        %v463 = vpop.f32.mrb[0].mxu0
        %v464 = vadd.f32 0.0, %v463
        %v465 = vpop.f32.mrb[0].mxu0
        %466 = vmatprep.mubr.f32.mxu0 0.0
        %467 = vmatmul.mubr.f32.gmra.mrb[0].mxu0 %v382
        %v468 = vpop.f32.mrb[0].mxu0
        %v469 = vadd.f32 0.0, %v468
        %v470 = vpop.f32.mrb[0].mxu0
        %471 = vdwg.mxu0
        %vm472 = vcmask 64512
        %473 = vst.msk [vmem:[#allocation2] sm:$0xff] %vm472, %v454
        %474 = vst.msk [vmem:[#allocation2 + $0x8] sm:$0xff] %vm472, %v459
        %475 = vst.msk [vmem:[#allocation2 + $0x10] sm:$0xff] %vm472, %v464
        %476 = vst.msk [vmem:[#allocation2 + $0x18] sm:$0xff] %vm472, %v469
        %477 = vst [vmem:[#allocation3] sm:$0xff] 0.0
        %478 = vst [vmem:[#allocation3 + $0x8] sm:$0xff] 0.0
        %479 = vst [vmem:[#allocation3 + $0x10] sm:$0xff] 0.0
        %480 = vst [vmem:[#allocation3 + $0x18] sm:$0xff] 0.0
        %481 = vst [vmem:[#allocation3 + $0x20] sm:$0xff] 0.0
        %482 = vst [vmem:[#allocation3 + $0x28] sm:$0xff] 0.0
        %483 = vst [vmem:[#allocation3 + $0x30] sm:$0xff] 0.0
        %484 = vst [vmem:[#allocation3 + $0x38] sm:$0xff] 0.0
        %v485 = vld [vmem:[#allocation2] sm:$0xff]
        %v486 = vld [vmem:[%s357] sm:$0xff]
        %v487 = vld [vmem:[%s5] sm:$0xff]
        %488 = vxpose.xlu0.b32.start [1/16] %v485, 128
        %489 = vxpose.xlu0.b32.cont [2/16] 0.0, 128
        %490 = vxpose.xlu0.b32.cont [3/16] 0.0, 128
        %491 = vxpose.xlu0.b32.cont [4/16] 0.0, 128
        %492 = vxpose.xlu0.b32.cont [5/16] 0.0, 128
        %493 = vxpose.xlu0.b32.cont [6/16] 0.0, 128
        %494 = vxpose.xlu0.b32.cont [7/16] 0.0, 128
        %495 = vxpose.xlu0.b32.cont [8/16] 0.0, 128
        %496 = vxpose.xlu0.b32.cont [9/16] 0.0, 128
        %497 = vxpose.xlu0.b32.cont [10/16] 0.0, 128
        %498 = vxpose.xlu0.b32.cont [11/16] 0.0, 128
        %499 = vxpose.xlu0.b32.cont [12/16] 0.0, 128
        %500 = vxpose.xlu0.b32.cont [13/16] 0.0, 128
        %501 = vxpose.xlu0.b32.cont [14/16] 0.0, 128
        %502 = vxpose.xlu0.b32.cont [15/16] 0.0, 128
        %503 = vxpose.xlu0.b32.end [16/16] 0.0, 128
        %v504 = vpop.trf.xlu0
        %v505 = vpop.trf.xlu0
        %v506 = vpop.trf.xlu0
        %v507 = vpop.trf.xlu0
        %v508 = vpop.trf.xlu0
        %v509 = vpop.trf.xlu0
        %v510 = vpop.trf.xlu0
        %v511 = vpop.trf.xlu0
        %v512 = vpop.trf.xlu0
        %v513 = vpop.trf.xlu0
        %v514 = vpop.trf.xlu0
        %v515 = vpop.trf.xlu0
        %v516 = vpop.trf.xlu0
        %v517 = vpop.trf.xlu0
        %v518 = vpop.trf.xlu0
        %v519 = vpop.trf.xlu0
        %v520 = vlaneseq
        %v521 = vshrl.u32 %v520, 7
        %v522 = vsub.s32 0, %v521
        %v523 = vrot.slane %v504, %v522
        %525 = vbcast.lane.b32.xlu0 %v523, 256
        %v526 = vpop.permute.xlu0 %525
        %v527 = vlaneseq
        %v528 = vshrl.u32 %v527, 7
        %v529 = vsub.s32 1, %v528
        %v530 = vrot.slane %v504, %v529
        %532 = vbcast.lane.b32.xlu0 %v530, 256
        %v533 = vpop.permute.xlu0 %532
        %v534 = vlaneseq
        %v535 = vshrl.u32 %v534, 7
        %v536 = vsub.s32 2, %v535
        %v537 = vrot.slane %v504, %v536
        %539 = vbcast.lane.b32.xlu0 %v537, 256
        %v540 = vpop.permute.xlu0 %539
        %v541 = vlaneseq
        %v542 = vshrl.u32 %v541, 7
        %v543 = vsub.s32 3, %v542
        %v544 = vrot.slane %v504, %v543
        %546 = vbcast.lane.b32.xlu0 %v544, 256
        %v547 = vpop.permute.xlu0 %546
        %v548 = vlaneseq
        %v549 = vshrl.u32 %v548, 7
        %v550 = vsub.s32 4, %v549
        %v551 = vrot.slane %v504, %v550
        %553 = vbcast.lane.b32.xlu0 %v551, 256
        %v554 = vpop.permute.xlu0 %553
        %v555 = vlaneseq
        %v556 = vshrl.u32 %v555, 7
        %v557 = vsub.s32 5, %v556
        %v558 = vrot.slane %v504, %v557
        %560 = vbcast.lane.b32.xlu0 %v558, 256
        %v561 = vpop.permute.xlu0 %560
        %v562 = vlaneseq
        %v563 = vshrl.u32 %v562, 7
        %v564 = vsub.s32 6, %v563
        %v565 = vrot.slane %v504, %v564
        %567 = vbcast.lane.b32.xlu0 %v565, 256
        %v568 = vpop.permute.xlu0 %567
        %v569 = vlaneseq
        %v570 = vshrl.u32 %v569, 7
        %v571 = vsub.s32 7, %v570
        %v572 = vrot.slane %v504, %v571
        %574 = vbcast.lane.b32.xlu0 %v572, 256
        %v575 = vpop.permute.xlu0 %574
        %v576 = vadd.f32 %v526, %v486
        %v577 = vadd.f32 %v533, %v486
        %v578 = vadd.f32 %v540, %v486
        %v579 = vadd.f32 %v547, %v486
        %v580 = vadd.f32 %v554, %v486
        %v581 = vadd.f32 %v561, %v486
        %v582 = vadd.f32 %v568, %v486
        %v583 = vadd.f32 %v575, %v486
        %v584 = vld [vmem:[#allocation3] sm:$0xff]
        %v585 = vld [vmem:[#allocation3 + $0x8] sm:$0xff]
        %v586 = vld [vmem:[#allocation3 + $0x10] sm:$0xff]
        %v587 = vld [vmem:[#allocation3 + $0x18] sm:$0xff]
        %v588 = vld [vmem:[#allocation3 + $0x20] sm:$0xff]
        %v589 = vld [vmem:[#allocation3 + $0x28] sm:$0xff]
        %v590 = vld [vmem:[#allocation3 + $0x30] sm:$0xff]
        %v591 = vld [vmem:[#allocation3 + $0x38] sm:$0xff]
        %v592 = vmax.f32 %v576, 0.0
        %v593 = vmax.f32 %v577, 0.0
        %v594 = vmax.f32 %v578, 0.0
        %v595 = vmax.f32 %v579, 0.0
        %v596 = vmax.f32 %v580, 0.0
        %v597 = vmax.f32 %v581, 0.0
        %v598 = vmax.f32 %v582, 0.0
        %v599 = vmax.f32 %v583, 0.0
        %601 = vset.pattern.permute.xlu0 0
        %602 = vperm.xlu0 %601, %v487
        %v603 = vpop.permute.xlu0 %602
        %v605 = vmul.f32 %v592, %v603
        %v606 = vmul.f32 %v593, %v603
        %v607 = vmul.f32 %v594, %v603
        %v608 = vmul.f32 %v595, %v603
        %v609 = vmul.f32 %v596, %v603
        %v610 = vmul.f32 %v597, %v603
        %v611 = vmul.f32 %v598, %v603
        %v612 = vmul.f32 %v599, %v603
        %v613 = vadd.f32 %v584, %v605
        %v614 = vadd.f32 %v585, %v606
        %v615 = vadd.f32 %v586, %v607
        %v616 = vadd.f32 %v587, %v608
        %v617 = vadd.f32 %v588, %v609
        %v618 = vadd.f32 %v589, %v610
        %v619 = vadd.f32 %v590, %v611
        %v620 = vadd.f32 %v591, %v612
        %621 = vst [vmem:[#allocation3] sm:$0xff] %v613
        %622 = vst [vmem:[#allocation3 + $0x8] sm:$0xff] %v614
        %623 = vst [vmem:[#allocation3 + $0x10] sm:$0xff] %v615
        %624 = vst [vmem:[#allocation3 + $0x18] sm:$0xff] %v616
        %625 = vst [vmem:[#allocation3 + $0x20] sm:$0xff] %v617
        %626 = vst [vmem:[#allocation3 + $0x28] sm:$0xff] %v618
        %627 = vst [vmem:[#allocation3 + $0x30] sm:$0xff] %v619
        %628 = vst [vmem:[#allocation3 + $0x38] sm:$0xff] %v620
        %s629 = scalar_lea.vmem [#allocation2], 8
        %v630 = vld [vmem:[%s629] sm:$0xff]
        %s631 = scalar_lea.vmem %s357, 8
        %v632 = vld [vmem:[%s631] sm:$0xff]
        %s633 = scalar_lea.vmem %s5, 8
        %v634 = vld [vmem:[%s633] sm:$0xff]
        %635 = vxpose.xlu0.b32.start [1/16] %v630, 128
        %636 = vxpose.xlu0.b32.cont [2/16] 0.0, 128
        %637 = vxpose.xlu0.b32.cont [3/16] 0.0, 128
        %638 = vxpose.xlu0.b32.cont [4/16] 0.0, 128
        %639 = vxpose.xlu0.b32.cont [5/16] 0.0, 128
        %640 = vxpose.xlu0.b32.cont [6/16] 0.0, 128
        %641 = vxpose.xlu0.b32.cont [7/16] 0.0, 128
        %642 = vxpose.xlu0.b32.cont [8/16] 0.0, 128
        %643 = vxpose.xlu0.b32.cont [9/16] 0.0, 128
        %644 = vxpose.xlu0.b32.cont [10/16] 0.0, 128
        %645 = vxpose.xlu0.b32.cont [11/16] 0.0, 128
        %646 = vxpose.xlu0.b32.cont [12/16] 0.0, 128
        %647 = vxpose.xlu0.b32.cont [13/16] 0.0, 128
        %648 = vxpose.xlu0.b32.cont [14/16] 0.0, 128
        %649 = vxpose.xlu0.b32.cont [15/16] 0.0, 128
        %650 = vxpose.xlu0.b32.end [16/16] 0.0, 128
        %v651 = vpop.trf.xlu0
        %v652 = vpop.trf.xlu0
        %v653 = vpop.trf.xlu0
        %v654 = vpop.trf.xlu0
        %v655 = vpop.trf.xlu0
        %v656 = vpop.trf.xlu0
        %v657 = vpop.trf.xlu0
        %v658 = vpop.trf.xlu0
        %v659 = vpop.trf.xlu0
        %v660 = vpop.trf.xlu0
        %v661 = vpop.trf.xlu0
        %v662 = vpop.trf.xlu0
        %v663 = vpop.trf.xlu0
        %v664 = vpop.trf.xlu0
        %v665 = vpop.trf.xlu0
        %v666 = vpop.trf.xlu0
        %v667 = vlaneseq
        %v668 = vshrl.u32 %v667, 7
        %v669 = vsub.s32 0, %v668
        %v670 = vrot.slane %v651, %v669
        %672 = vbcast.lane.b32.xlu0 %v670, 256
        %v673 = vpop.permute.xlu0 %672
        %v674 = vlaneseq
        %v675 = vshrl.u32 %v674, 7
        %v676 = vsub.s32 1, %v675
        %v677 = vrot.slane %v651, %v676
        %679 = vbcast.lane.b32.xlu0 %v677, 256
        %v680 = vpop.permute.xlu0 %679
        %v681 = vlaneseq
        %v682 = vshrl.u32 %v681, 7
        %v683 = vsub.s32 2, %v682
        %v684 = vrot.slane %v651, %v683
        %686 = vbcast.lane.b32.xlu0 %v684, 256
        %v687 = vpop.permute.xlu0 %686
        %v688 = vlaneseq
        %v689 = vshrl.u32 %v688, 7
        %v690 = vsub.s32 3, %v689
        %v691 = vrot.slane %v651, %v690
        %693 = vbcast.lane.b32.xlu0 %v691, 256
        %v694 = vpop.permute.xlu0 %693
        %v695 = vlaneseq
        %v696 = vshrl.u32 %v695, 7
        %v697 = vsub.s32 4, %v696
        %v698 = vrot.slane %v651, %v697
        %700 = vbcast.lane.b32.xlu0 %v698, 256
        %v701 = vpop.permute.xlu0 %700
        %v702 = vlaneseq
        %v703 = vshrl.u32 %v702, 7
        %v704 = vsub.s32 5, %v703
        %v705 = vrot.slane %v651, %v704
        %707 = vbcast.lane.b32.xlu0 %v705, 256
        %v708 = vpop.permute.xlu0 %707
        %v709 = vlaneseq
        %v710 = vshrl.u32 %v709, 7
        %v711 = vsub.s32 6, %v710
        %v712 = vrot.slane %v651, %v711
        %714 = vbcast.lane.b32.xlu0 %v712, 256
        %v715 = vpop.permute.xlu0 %714
        %v716 = vlaneseq
        %v717 = vshrl.u32 %v716, 7
        %v718 = vsub.s32 7, %v717
        %v719 = vrot.slane %v651, %v718
        %721 = vbcast.lane.b32.xlu0 %v719, 256
        %v722 = vpop.permute.xlu0 %721
        %v723 = vadd.f32 %v673, %v632
        %v724 = vadd.f32 %v680, %v632
        %v725 = vadd.f32 %v687, %v632
        %v726 = vadd.f32 %v694, %v632
        %v727 = vadd.f32 %v701, %v632
        %v728 = vadd.f32 %v708, %v632
        %v729 = vadd.f32 %v715, %v632
        %v730 = vadd.f32 %v722, %v632
        %v731 = vld [vmem:[#allocation3] sm:$0xff]
        %v732 = vld [vmem:[#allocation3 + $0x8] sm:$0xff]
        %v733 = vld [vmem:[#allocation3 + $0x10] sm:$0xff]
        %v734 = vld [vmem:[#allocation3 + $0x18] sm:$0xff]
        %v735 = vld [vmem:[#allocation3 + $0x20] sm:$0xff]
        %v736 = vld [vmem:[#allocation3 + $0x28] sm:$0xff]
        %v737 = vld [vmem:[#allocation3 + $0x30] sm:$0xff]
        %v738 = vld [vmem:[#allocation3 + $0x38] sm:$0xff]
        %v739 = vmax.f32 %v723, 0.0
        %v740 = vmax.f32 %v724, 0.0
        %v741 = vmax.f32 %v725, 0.0
        %v742 = vmax.f32 %v726, 0.0
        %v743 = vmax.f32 %v727, 0.0
        %v744 = vmax.f32 %v728, 0.0
        %v745 = vmax.f32 %v729, 0.0
        %v746 = vmax.f32 %v730, 0.0
        %748 = vset.pattern.permute.xlu0 0
        %749 = vperm.xlu0 %748, %v634
        %v750 = vpop.permute.xlu0 %749
        %v752 = vmul.f32 %v739, %v750
        %v753 = vmul.f32 %v740, %v750
        %v754 = vmul.f32 %v741, %v750
        %v755 = vmul.f32 %v742, %v750
        %v756 = vmul.f32 %v743, %v750
        %v757 = vmul.f32 %v744, %v750
        %v758 = vmul.f32 %v745, %v750
        %v759 = vmul.f32 %v746, %v750
        %v760 = vadd.f32 %v731, %v752
        %v761 = vadd.f32 %v732, %v753
        %v762 = vadd.f32 %v733, %v754
        %v763 = vadd.f32 %v734, %v755
        %v764 = vadd.f32 %v735, %v756
        %v765 = vadd.f32 %v736, %v757
        %v766 = vadd.f32 %v737, %v758
        %v767 = vadd.f32 %v738, %v759
        %768 = vst [vmem:[#allocation3] sm:$0xff] %v760
        %769 = vst [vmem:[#allocation3 + $0x8] sm:$0xff] %v761
        %770 = vst [vmem:[#allocation3 + $0x10] sm:$0xff] %v762
        %771 = vst [vmem:[#allocation3 + $0x18] sm:$0xff] %v763
        %772 = vst [vmem:[#allocation3 + $0x20] sm:$0xff] %v764
        %773 = vst [vmem:[#allocation3 + $0x28] sm:$0xff] %v765
        %774 = vst [vmem:[#allocation3 + $0x30] sm:$0xff] %v766
        %775 = vst [vmem:[#allocation3 + $0x38] sm:$0xff] %v767
        %s776 = scalar_lea.vmem [#allocation2], 16
        %v777 = vld [vmem:[%s776] sm:$0xff]
        %s778 = scalar_lea.vmem %s357, 16
        %v779 = vld [vmem:[%s778] sm:$0xff]
        %s780 = scalar_lea.vmem %s5, 16
        %v781 = vld [vmem:[%s780] sm:$0xff]
        %782 = vxpose.xlu0.b32.start [1/16] %v777, 128
        %783 = vxpose.xlu0.b32.cont [2/16] 0.0, 128
        %784 = vxpose.xlu0.b32.cont [3/16] 0.0, 128
        %785 = vxpose.xlu0.b32.cont [4/16] 0.0, 128
        %786 = vxpose.xlu0.b32.cont [5/16] 0.0, 128
        %787 = vxpose.xlu0.b32.cont [6/16] 0.0, 128
        %788 = vxpose.xlu0.b32.cont [7/16] 0.0, 128
        %789 = vxpose.xlu0.b32.cont [8/16] 0.0, 128
        %790 = vxpose.xlu0.b32.cont [9/16] 0.0, 128
        %791 = vxpose.xlu0.b32.cont [10/16] 0.0, 128
        %792 = vxpose.xlu0.b32.cont [11/16] 0.0, 128
        %793 = vxpose.xlu0.b32.cont [12/16] 0.0, 128
        %794 = vxpose.xlu0.b32.cont [13/16] 0.0, 128
        %795 = vxpose.xlu0.b32.cont [14/16] 0.0, 128
        %796 = vxpose.xlu0.b32.cont [15/16] 0.0, 128
        %797 = vxpose.xlu0.b32.end [16/16] 0.0, 128
        %v798 = vpop.trf.xlu0
        %v799 = vpop.trf.xlu0
        %v800 = vpop.trf.xlu0
        %v801 = vpop.trf.xlu0
        %v802 = vpop.trf.xlu0
        %v803 = vpop.trf.xlu0
        %v804 = vpop.trf.xlu0
        %v805 = vpop.trf.xlu0
        %v806 = vpop.trf.xlu0
        %v807 = vpop.trf.xlu0
        %v808 = vpop.trf.xlu0
        %v809 = vpop.trf.xlu0
        %v810 = vpop.trf.xlu0
        %v811 = vpop.trf.xlu0
        %v812 = vpop.trf.xlu0
        %v813 = vpop.trf.xlu0
        %v814 = vlaneseq
        %v815 = vshrl.u32 %v814, 7
        %v816 = vsub.s32 0, %v815
        %v817 = vrot.slane %v798, %v816
        %819 = vbcast.lane.b32.xlu0 %v817, 256
        %v820 = vpop.permute.xlu0 %819
        %v821 = vlaneseq
        %v822 = vshrl.u32 %v821, 7
        %v823 = vsub.s32 1, %v822
        %v824 = vrot.slane %v798, %v823
        %826 = vbcast.lane.b32.xlu0 %v824, 256
        %v827 = vpop.permute.xlu0 %826
        %v828 = vlaneseq
        %v829 = vshrl.u32 %v828, 7
        %v830 = vsub.s32 2, %v829
        %v831 = vrot.slane %v798, %v830
        %833 = vbcast.lane.b32.xlu0 %v831, 256
        %v834 = vpop.permute.xlu0 %833
        %v835 = vlaneseq
        %v836 = vshrl.u32 %v835, 7
        %v837 = vsub.s32 3, %v836
        %v838 = vrot.slane %v798, %v837
        %840 = vbcast.lane.b32.xlu0 %v838, 256
        %v841 = vpop.permute.xlu0 %840
        %v842 = vlaneseq
        %v843 = vshrl.u32 %v842, 7
        %v844 = vsub.s32 4, %v843
        %v845 = vrot.slane %v798, %v844
        %847 = vbcast.lane.b32.xlu0 %v845, 256
        %v848 = vpop.permute.xlu0 %847
        %v849 = vlaneseq
        %v850 = vshrl.u32 %v849, 7
        %v851 = vsub.s32 5, %v850
        %v852 = vrot.slane %v798, %v851
        %854 = vbcast.lane.b32.xlu0 %v852, 256
        %v855 = vpop.permute.xlu0 %854
        %v856 = vlaneseq
        %v857 = vshrl.u32 %v856, 7
        %v858 = vsub.s32 6, %v857
        %v859 = vrot.slane %v798, %v858
        %861 = vbcast.lane.b32.xlu0 %v859, 256
        %v862 = vpop.permute.xlu0 %861
        %v863 = vlaneseq
        %v864 = vshrl.u32 %v863, 7
        %v865 = vsub.s32 7, %v864
        %v866 = vrot.slane %v798, %v865
        %868 = vbcast.lane.b32.xlu0 %v866, 256
        %v869 = vpop.permute.xlu0 %868
        %v870 = vadd.f32 %v820, %v779
        %v871 = vadd.f32 %v827, %v779
        %v872 = vadd.f32 %v834, %v779
        %v873 = vadd.f32 %v841, %v779
        %v874 = vadd.f32 %v848, %v779
        %v875 = vadd.f32 %v855, %v779
        %v876 = vadd.f32 %v862, %v779
        %v877 = vadd.f32 %v869, %v779
        %v878 = vld [vmem:[#allocation3] sm:$0xff]
        %v879 = vld [vmem:[#allocation3 + $0x8] sm:$0xff]
        %v880 = vld [vmem:[#allocation3 + $0x10] sm:$0xff]
        %v881 = vld [vmem:[#allocation3 + $0x18] sm:$0xff]
        %v882 = vld [vmem:[#allocation3 + $0x20] sm:$0xff]
        %v883 = vld [vmem:[#allocation3 + $0x28] sm:$0xff]
        %v884 = vld [vmem:[#allocation3 + $0x30] sm:$0xff]
        %v885 = vld [vmem:[#allocation3 + $0x38] sm:$0xff]
        %v886 = vmax.f32 %v870, 0.0
        %v887 = vmax.f32 %v871, 0.0
        %v888 = vmax.f32 %v872, 0.0
        %v889 = vmax.f32 %v873, 0.0
        %v890 = vmax.f32 %v874, 0.0
        %v891 = vmax.f32 %v875, 0.0
        %v892 = vmax.f32 %v876, 0.0
        %v893 = vmax.f32 %v877, 0.0
        %895 = vset.pattern.permute.xlu0 0
        %896 = vperm.xlu0 %895, %v781
        %v897 = vpop.permute.xlu0 %896
        %v899 = vmul.f32 %v886, %v897
        %v900 = vmul.f32 %v887, %v897
        %v901 = vmul.f32 %v888, %v897
        %v902 = vmul.f32 %v889, %v897
        %v903 = vmul.f32 %v890, %v897
        %v904 = vmul.f32 %v891, %v897
        %v905 = vmul.f32 %v892, %v897
        %v906 = vmul.f32 %v893, %v897
        %v907 = vadd.f32 %v878, %v899
        %v908 = vadd.f32 %v879, %v900
        %v909 = vadd.f32 %v880, %v901
        %v910 = vadd.f32 %v881, %v902
        %v911 = vadd.f32 %v882, %v903
        %v912 = vadd.f32 %v883, %v904
        %v913 = vadd.f32 %v884, %v905
        %v914 = vadd.f32 %v885, %v906
        %915 = vst [vmem:[#allocation3] sm:$0xff] %v907
        %916 = vst [vmem:[#allocation3 + $0x8] sm:$0xff] %v908
        %917 = vst [vmem:[#allocation3 + $0x10] sm:$0xff] %v909
        %918 = vst [vmem:[#allocation3 + $0x18] sm:$0xff] %v910
        %919 = vst [vmem:[#allocation3 + $0x20] sm:$0xff] %v911
        %920 = vst [vmem:[#allocation3 + $0x28] sm:$0xff] %v912
        %921 = vst [vmem:[#allocation3 + $0x30] sm:$0xff] %v913
        %922 = vst [vmem:[#allocation3 + $0x38] sm:$0xff] %v914
        %s923 = scalar_lea.vmem [#allocation2], 24
        %v924 = vld [vmem:[%s923] sm:$0xff]
        %s925 = scalar_lea.vmem %s357, 24
        %v926 = vld [vmem:[%s925] sm:$0xff]
        %s927 = scalar_lea.vmem %s5, 24
        %v928 = vld [vmem:[%s927] sm:$0xff]
        %929 = vxpose.xlu0.b32.start [1/16] %v924, 128
        %930 = vxpose.xlu0.b32.cont [2/16] 0.0, 128
        %931 = vxpose.xlu0.b32.cont [3/16] 0.0, 128
        %932 = vxpose.xlu0.b32.cont [4/16] 0.0, 128
        %933 = vxpose.xlu0.b32.cont [5/16] 0.0, 128
        %934 = vxpose.xlu0.b32.cont [6/16] 0.0, 128
        %935 = vxpose.xlu0.b32.cont [7/16] 0.0, 128
        %936 = vxpose.xlu0.b32.cont [8/16] 0.0, 128
        %937 = vxpose.xlu0.b32.cont [9/16] 0.0, 128
        %938 = vxpose.xlu0.b32.cont [10/16] 0.0, 128
        %939 = vxpose.xlu0.b32.cont [11/16] 0.0, 128
        %940 = vxpose.xlu0.b32.cont [12/16] 0.0, 128
        %941 = vxpose.xlu0.b32.cont [13/16] 0.0, 128
        %942 = vxpose.xlu0.b32.cont [14/16] 0.0, 128
        %943 = vxpose.xlu0.b32.cont [15/16] 0.0, 128
        %944 = vxpose.xlu0.b32.end [16/16] 0.0, 128
        %v945 = vpop.trf.xlu0
        %v946 = vpop.trf.xlu0
        %v947 = vpop.trf.xlu0
        %v948 = vpop.trf.xlu0
        %v949 = vpop.trf.xlu0
        %v950 = vpop.trf.xlu0
        %v951 = vpop.trf.xlu0
        %v952 = vpop.trf.xlu0
        %v953 = vpop.trf.xlu0
        %v954 = vpop.trf.xlu0
        %v955 = vpop.trf.xlu0
        %v956 = vpop.trf.xlu0
        %v957 = vpop.trf.xlu0
        %v958 = vpop.trf.xlu0
        %v959 = vpop.trf.xlu0
        %v960 = vpop.trf.xlu0
        %v961 = vlaneseq
        %v962 = vshrl.u32 %v961, 7
        %v963 = vsub.s32 0, %v962
        %v964 = vrot.slane %v945, %v963
        %966 = vbcast.lane.b32.xlu0 %v964, 256
        %v967 = vpop.permute.xlu0 %966
        %v968 = vlaneseq
        %v969 = vshrl.u32 %v968, 7
        %v970 = vsub.s32 1, %v969
        %v971 = vrot.slane %v945, %v970
        %973 = vbcast.lane.b32.xlu0 %v971, 256
        %v974 = vpop.permute.xlu0 %973
        %v975 = vlaneseq
        %v976 = vshrl.u32 %v975, 7
        %v977 = vsub.s32 2, %v976
        %v978 = vrot.slane %v945, %v977
        %980 = vbcast.lane.b32.xlu0 %v978, 256
        %v981 = vpop.permute.xlu0 %980
        %v982 = vlaneseq
        %v983 = vshrl.u32 %v982, 7
        %v984 = vsub.s32 3, %v983
        %v985 = vrot.slane %v945, %v984
        %987 = vbcast.lane.b32.xlu0 %v985, 256
        %v988 = vpop.permute.xlu0 %987
        %v989 = vlaneseq
        %v990 = vshrl.u32 %v989, 7
        %v991 = vsub.s32 4, %v990
        %v992 = vrot.slane %v945, %v991
        %994 = vbcast.lane.b32.xlu0 %v992, 256
        %v995 = vpop.permute.xlu0 %994
        %v996 = vlaneseq
        %v997 = vshrl.u32 %v996, 7
        %v998 = vsub.s32 5, %v997
        %v999 = vrot.slane %v945, %v998
        %1001 = vbcast.lane.b32.xlu0 %v999, 256
        %v1002 = vpop.permute.xlu0 %1001
        %v1003 = vlaneseq
        %v1004 = vshrl.u32 %v1003, 7
        %v1005 = vsub.s32 6, %v1004
        %v1006 = vrot.slane %v945, %v1005
        %1008 = vbcast.lane.b32.xlu0 %v1006, 256
        %v1009 = vpop.permute.xlu0 %1008
        %v1010 = vlaneseq
        %v1011 = vshrl.u32 %v1010, 7
        %v1012 = vsub.s32 7, %v1011
        %v1013 = vrot.slane %v945, %v1012
        %1015 = vbcast.lane.b32.xlu0 %v1013, 256
        %v1016 = vpop.permute.xlu0 %1015
        %v1017 = vadd.f32 %v967, %v926
        %v1018 = vadd.f32 %v974, %v926
        %v1019 = vadd.f32 %v981, %v926
        %v1020 = vadd.f32 %v988, %v926
        %v1021 = vadd.f32 %v995, %v926
        %v1022 = vadd.f32 %v1002, %v926
        %v1023 = vadd.f32 %v1009, %v926
        %v1024 = vadd.f32 %v1016, %v926
        %v1025 = vld [vmem:[#allocation3] sm:$0xff]
        %v1026 = vld [vmem:[#allocation3 + $0x8] sm:$0xff]
        %v1027 = vld [vmem:[#allocation3 + $0x10] sm:$0xff]
        %v1028 = vld [vmem:[#allocation3 + $0x18] sm:$0xff]
        %v1029 = vld [vmem:[#allocation3 + $0x20] sm:$0xff]
        %v1030 = vld [vmem:[#allocation3 + $0x28] sm:$0xff]
        %v1031 = vld [vmem:[#allocation3 + $0x30] sm:$0xff]
        %v1032 = vld [vmem:[#allocation3 + $0x38] sm:$0xff]
        %v1033 = vmax.f32 %v1017, 0.0
        %v1034 = vmax.f32 %v1018, 0.0
        %v1035 = vmax.f32 %v1019, 0.0
        %v1036 = vmax.f32 %v1020, 0.0
        %v1037 = vmax.f32 %v1021, 0.0
        %v1038 = vmax.f32 %v1022, 0.0
        %v1039 = vmax.f32 %v1023, 0.0
        %v1040 = vmax.f32 %v1024, 0.0
        %1042 = vset.pattern.permute.xlu0 0
        %1043 = vperm.xlu0 %1042, %v928
        %v1044 = vpop.permute.xlu0 %1043
        %v1046 = vmul.f32 %v1033, %v1044
        %v1047 = vmul.f32 %v1034, %v1044
        %v1048 = vmul.f32 %v1035, %v1044
        %v1049 = vmul.f32 %v1036, %v1044
        %v1050 = vmul.f32 %v1037, %v1044
        %v1051 = vmul.f32 %v1038, %v1044
        %v1052 = vmul.f32 %v1039, %v1044
        %v1053 = vmul.f32 %v1040, %v1044
        %v1054 = vadd.f32 %v1025, %v1046
        %v1055 = vadd.f32 %v1026, %v1047
        %v1056 = vadd.f32 %v1027, %v1048
        %v1057 = vadd.f32 %v1028, %v1049
        %v1058 = vadd.f32 %v1029, %v1050
        %v1059 = vadd.f32 %v1030, %v1051
        %v1060 = vadd.f32 %v1031, %v1052
        %v1061 = vadd.f32 %v1032, %v1053
        %1062 = vst [vmem:[#allocation3] sm:$0xff] %v1054
        %1063 = vst [vmem:[#allocation3 + $0x8] sm:$0xff] %v1055
        %1064 = vst [vmem:[#allocation3 + $0x10] sm:$0xff] %v1056
        %1065 = vst [vmem:[#allocation3 + $0x18] sm:$0xff] %v1057
        %1066 = vst [vmem:[#allocation3 + $0x20] sm:$0xff] %v1058
        %1067 = vst [vmem:[#allocation3 + $0x28] sm:$0xff] %v1059
        %1068 = vst [vmem:[#allocation3 + $0x30] sm:$0xff] %v1060
        %1069 = vst [vmem:[#allocation3 + $0x38] sm:$0xff] %v1061
        %v1070 = vld [vmem:[#allocation3] sm:$0xff]
        %v1071 = vld [vmem:[#allocation3 + $0x8] sm:$0xff]
        %v1072 = vld [vmem:[#allocation3 + $0x10] sm:$0xff]
        %v1073 = vld [vmem:[#allocation3 + $0x18] sm:$0xff]
        %v1074 = vld [vmem:[#allocation3 + $0x20] sm:$0xff]
        %v1075 = vld [vmem:[#allocation3 + $0x28] sm:$0xff]
        %v1076 = vld [vmem:[#allocation3 + $0x30] sm:$0xff]
        %v1077 = vld [vmem:[#allocation3 + $0x38] sm:$0xff]
        %v1078 = vrot.slane %v1070, 4
        %v1079 = vadd.f32 %v1070, %v1078
        %v1080 = vrot.slane %v1079, 2
        %v1081 = vadd.f32 %v1079, %v1080
        %v1082 = vrot.slane %v1081, 1
        %v1083 = vadd.f32 %v1081, %v1082
        %v1084 = vrot.slane %v1071, 4
        %v1085 = vadd.f32 %v1071, %v1084
        %v1086 = vrot.slane %v1085, 2
        %v1087 = vadd.f32 %v1085, %v1086
        %v1088 = vrot.slane %v1087, 1
        %v1089 = vadd.f32 %v1087, %v1088
        %v1090 = vrot.slane %v1072, 4
        %v1091 = vadd.f32 %v1072, %v1090
        %v1092 = vrot.slane %v1091, 2
        %v1093 = vadd.f32 %v1091, %v1092
        %v1094 = vrot.slane %v1093, 1
        %v1095 = vadd.f32 %v1093, %v1094
        %v1096 = vrot.slane %v1073, 4
        %v1097 = vadd.f32 %v1073, %v1096
        %v1098 = vrot.slane %v1097, 2
        %v1099 = vadd.f32 %v1097, %v1098
        %v1100 = vrot.slane %v1099, 1
        %v1101 = vadd.f32 %v1099, %v1100
        %v1102 = vrot.slane %v1074, 4
        %v1103 = vadd.f32 %v1074, %v1102
        %v1104 = vrot.slane %v1103, 2
        %v1105 = vadd.f32 %v1103, %v1104
        %v1106 = vrot.slane %v1105, 1
        %v1107 = vadd.f32 %v1105, %v1106
        %v1108 = vrot.slane %v1075, 4
        %v1109 = vadd.f32 %v1075, %v1108
        %v1110 = vrot.slane %v1109, 2
        %v1111 = vadd.f32 %v1109, %v1110
        %v1112 = vrot.slane %v1111, 1
        %v1113 = vadd.f32 %v1111, %v1112
        %v1114 = vrot.slane %v1076, 4
        %v1115 = vadd.f32 %v1076, %v1114
        %v1116 = vrot.slane %v1115, 2
        %v1117 = vadd.f32 %v1115, %v1116
        %v1118 = vrot.slane %v1117, 1
        %v1119 = vadd.f32 %v1117, %v1118
        %v1120 = vrot.slane %v1077, 4
        %v1121 = vadd.f32 %v1077, %v1120
        %v1122 = vrot.slane %v1121, 2
        %v1123 = vadd.f32 %v1121, %v1122
        %v1124 = vrot.slane %v1123, 1
        %v1125 = vadd.f32 %v1123, %v1124
        %v1126 = vld [vmem:[%s360] sm:$0x1]
        %v1128 = vlaneseq
        %v1129 = vshrl.u32 %v1128, 7
        %v1130 = vsub.s32 0, %v1129
        %v1131 = vrot.slane %v1126, %v1130
        %v1133 = vadd.f32 %v1083, %v1131
        %v1134 = vadd.f32 %v1089, %v1131
        %v1135 = vadd.f32 %v1095, %v1131
        %v1136 = vadd.f32 %v1101, %v1131
        %v1137 = vadd.f32 %v1107, %v1131
        %v1138 = vadd.f32 %v1113, %v1131
        %v1139 = vadd.f32 %v1119, %v1131
        %v1140 = vadd.f32 %v1125, %v1131
        %v1149 = vrot.slane %v1134, 7
        %vm1150 = vcmask 1041409
        %v1151 = vsel %vm1150, %v1149, %v1133
        %v1152 = vrot.slane %v1135, 6
        %vm1153 = vcmask 1042434
        %v1154 = vsel %vm1153, %v1152, %v1151
        %v1155 = vrot.slane %v1136, 5
        %vm1156 = vcmask 1043459
        %v1157 = vsel %vm1156, %v1155, %v1154
        %v1158 = vrot.slane %v1137, 4
        %vm1159 = vcmask 1044484
        %v1160 = vsel %vm1159, %v1158, %v1157
        %v1161 = vrot.slane %v1138, 3
        %vm1162 = vcmask 1045509
        %v1163 = vsel %vm1162, %v1161, %v1160
        %v1164 = vrot.slane %v1139, 2
        %vm1165 = vcmask 1046534
        %v1166 = vsel %vm1165, %v1164, %v1163
        %v1167 = vrot.slane %v1140, 1
        %vm1168 = vcmask 1047559
        %v1169 = vsel %vm1168, %v1167, %v1166
        %1171 = vmax.xlane.f32.xlu0 %v1169
        %v1172 = vpop.xlane.xlu0 %1171
        %v1174 = vrot.slane %v1172, 1
        %v1175 = vrot.slane %v1172, 2
        %v1176 = vrot.slane %v1172, 3
        %v1177 = vrot.slane %v1172, 4
        %v1178 = vrot.slane %v1172, 5
        %v1179 = vrot.slane %v1172, 6
        %v1180 = vrot.slane %v1172, 7
        %v1189 = vsub.f32 %v1133, %v1172
        %v1190 = vsub.f32 %v1134, %v1174
        %v1191 = vsub.f32 %v1135, %v1175
        %v1192 = vsub.f32 %v1136, %v1176
        %v1193 = vsub.f32 %v1137, %v1177
        %v1194 = vsub.f32 %v1138, %v1178
        %v1195 = vsub.f32 %v1139, %v1179
        %v1196 = vsub.f32 %v1140, %v1180
        %v1197 = vmul.f32 %v1189, 1.442695
        %v1198 = vpow.pop %v1197
        %v1199 = vmul.f32 %v1190, 1.442695
        %v1200 = vpow.pop %v1199
        %v1201 = vmul.f32 %v1191, 1.442695
        %v1202 = vpow.pop %v1201
        %v1203 = vmul.f32 %v1192, 1.442695
        %v1204 = vpow.pop %v1203
        %v1205 = vmul.f32 %v1193, 1.442695
        %v1206 = vpow.pop %v1205
        %v1207 = vmul.f32 %v1194, 1.442695
        %v1208 = vpow.pop %v1207
        %v1209 = vmul.f32 %v1195, 1.442695
        %v1210 = vpow.pop %v1209
        %v1211 = vmul.f32 %v1196, 1.442695
        %v1212 = vpow.pop %v1211
        %v1221 = vrot.slane %v1200, 7
        %v1222 = vsel %vm1150, %v1221, %v1198
        %v1223 = vrot.slane %v1202, 6
        %v1224 = vsel %vm1153, %v1223, %v1222
        %v1225 = vrot.slane %v1204, 5
        %v1226 = vsel %vm1156, %v1225, %v1224
        %v1227 = vrot.slane %v1206, 4
        %v1228 = vsel %vm1159, %v1227, %v1226
        %v1229 = vrot.slane %v1208, 3
        %v1230 = vsel %vm1162, %v1229, %v1228
        %v1231 = vrot.slane %v1210, 2
        %v1232 = vsel %vm1165, %v1231, %v1230
        %v1233 = vrot.slane %v1212, 1
        %v1234 = vsel %vm1168, %v1233, %v1232
        %1236 = vadd.xlane.f32.xlu0 %v1234
        %v1237 = vpop.xlane.xlu0 %1236
        %v1238 = vrcp.pop %v1237
        %v1240 = vrot.slane %v1238, 1
        %v1241 = vrot.slane %v1238, 2
        %v1242 = vrot.slane %v1238, 3
        %v1243 = vrot.slane %v1238, 4
        %v1244 = vrot.slane %v1238, 5
        %v1245 = vrot.slane %v1238, 6
        %v1246 = vrot.slane %v1238, 7
        %v1255 = vmul.f32 %v1198, %v1238
        %v1256 = vmul.f32 %v1200, %v1240
        %v1257 = vmul.f32 %v1202, %v1241
        %v1258 = vmul.f32 %v1204, %v1242
        %v1259 = vmul.f32 %v1206, %v1243
        %v1260 = vmul.f32 %v1208, %v1244
        %v1261 = vmul.f32 %v1210, %v1245
        %v1262 = vmul.f32 %v1212, %v1246
        %v1263 = vld [vmem:[%s365] sm:$0xff]
        %v1264 = vld [vmem:[%s365 + $0x8] sm:$0xff]
        %v1265 = vld [vmem:[%s365 + $0x10] sm:$0xff]
        %v1266 = vld [vmem:[%s365 + $0x18] sm:$0xff]
        %v1267 = vld [vmem:[%s365 + $0x20] sm:$0xff]
        %v1268 = vld [vmem:[%s365 + $0x28] sm:$0xff]
        %v1269 = vld [vmem:[%s365 + $0x30] sm:$0xff]
        %v1270 = vld [vmem:[%s365 + $0x38] sm:$0xff]
        %v1271 = vld [vmem:[%s365 + $0x40] sm:$0xff]
        %v1272 = vld [vmem:[%s365 + $0x48] sm:$0xff]
        %v1273 = vld [vmem:[%s365 + $0x50] sm:$0xff]
        %v1274 = vld [vmem:[%s365 + $0x58] sm:$0xff]
        %v1275 = vld [vmem:[%s365 + $0x60] sm:$0xff]
        %v1276 = vld [vmem:[%s365 + $0x68] sm:$0xff]
        %v1277 = vld [vmem:[%s365 + $0x70] sm:$0xff]
        %v1278 = vld [vmem:[%s365 + $0x78] sm:$0xff]
        %v1287 = vrot.slane %v1256, 7
        %v1288 = vsel %vm1150, %v1287, %v1255
        %v1289 = vrot.slane %v1257, 6
        %v1290 = vsel %vm1153, %v1289, %v1288
        %v1291 = vrot.slane %v1258, 5
        %v1292 = vsel %vm1156, %v1291, %v1290
        %v1293 = vrot.slane %v1259, 4
        %v1294 = vsel %vm1159, %v1293, %v1292
        %v1295 = vrot.slane %v1260, 3
        %v1296 = vsel %vm1162, %v1295, %v1294
        %v1297 = vrot.slane %v1261, 2
        %v1298 = vsel %vm1165, %v1297, %v1296
        %v1299 = vrot.slane %v1262, 1
        %v1300 = vsel %vm1168, %v1299, %v1298
        %1302 = vmatprep.subr.mxu0 0.0
        %1303 = vmatpush1.msra.mxu0 %v1263
        %1304 = vmatprep.subr.mxu0 0.0
        %1305 = vmatpush1.msra.mxu0 %v1264
        %1306 = vmatprep.subr.mxu0 0.0
        %1307 = vmatpush1.msra.mxu0 %v1265
        %1308 = vmatprep.subr.mxu0 0.0
        %1309 = vmatpush1.msra.mxu0 %v1266
        %1310 = vmatprep.subr.mxu0 0.0
        %1311 = vmatpush1.msra.mxu0 %v1267
        %1312 = vmatprep.subr.mxu0 0.0
        %1313 = vmatpush1.msra.mxu0 %v1268
        %1314 = vmatprep.subr.mxu0 0.0
        %1315 = vmatpush1.msra.mxu0 %v1269
        %1316 = vmatprep.subr.mxu0 0.0
        %1317 = vmatpush1.msra.mxu0 %v1270
        %1318 = vmatprep.subr.mxu0 0.0
        %1319 = vmatpush1.msra.mxu0 %v1271
        %1320 = vmatprep.subr.mxu0 0.0
        %1321 = vmatpush1.msra.mxu0 %v1272
        %1322 = vmatprep.subr.mxu0 0.0
        %1323 = vmatpush1.msra.mxu0 %v1273
        %1324 = vmatprep.subr.mxu0 0.0
        %1325 = vmatpush1.msra.mxu0 %v1274
        %1326 = vmatprep.subr.mxu0 0.0
        %1327 = vmatpush1.msra.mxu0 %v1275
        %1328 = vmatprep.subr.mxu0 0.0
        %1329 = vmatpush1.msra.mxu0 %v1276
        %1330 = vmatprep.subr.mxu0 0.0
        %1331 = vmatpush1.msra.mxu0 %v1277
        %1332 = vmatprep.subr.mxu0 0.0
        %1333 = vmatpush1.msra.mxu0 %v1278
        %1334 = vmatprep.subr.mxu0 0.0
        %1335 = vmatpush1.msra.mxu0 0.0
        %1336 = vmatprep.subr.mxu0 0.0
        %1337 = vmatpush1.msra.mxu0 0.0
        %1338 = vmatprep.subr.mxu0 0.0
        %1339 = vmatpush1.msra.mxu0 0.0
        %1340 = vmatprep.subr.mxu0 0.0
        %1341 = vmatpush1.msra.mxu0 0.0
        %1342 = vmatprep.subr.mxu0 0.0
        %1343 = vmatpush1.msra.mxu0 0.0
        %1344 = vmatprep.subr.mxu0 0.0
        %1345 = vmatpush1.msra.mxu0 0.0
        %1346 = vmatprep.subr.mxu0 0.0
        %1347 = vmatpush1.msra.mxu0 0.0
        %1348 = vmatprep.subr.mxu0 0.0
        %1349 = vmatpush1.msra.mxu0 0.0
        %1350 = vmatprep.subr.mxu0 0.0
        %1351 = vmatpush1.msra.mxu0 0.0
        %1352 = vmatprep.subr.mxu0 0.0
        %1353 = vmatpush1.msra.mxu0 0.0
        %1354 = vmatprep.subr.mxu0 0.0
        %1355 = vmatpush1.msra.mxu0 0.0
        %1356 = vmatprep.subr.mxu0 0.0
        %1357 = vmatpush1.msra.mxu0 0.0
        %1358 = vmatprep.subr.mxu0 0.0
        %1359 = vmatpush1.msra.mxu0 0.0
        %1360 = vmatprep.subr.mxu0 0.0
        %1361 = vmatpush1.msra.mxu0 0.0
        %1362 = vmatprep.subr.mxu0 0.0
        %1363 = vmatpush1.msra.mxu0 0.0
        %1364 = vmatprep.subr.mxu0 0.0
        %1365 = vmatpush1.msra.mxu0 0.0
        %1366 = vmatprep.mubr.f32.mxu0 0.0
        %1367 = vmatmul.mubr.f32.gmra.mrb[0].mxu0 %v1300
        %v1368 = vpop.f32.mrb[0].mxu0
        %v1369 = vadd.f32 0.0, %v1368
        %v1370 = vpop.f32.mrb[0].mxu0
        %1371 = vdwg.mxu0
        %1372 = vst.msk [vmem:[%s338] sm:$0xff] %vm371, %v1369
        %1373 = vst [vmem:[%s345] sm:$0xff] %v1300
        %s1374 = sand.u32 %s195, 1
        %s1375 = scalar_lea.sflag [#allocation5], %s1374
        %s1376 = sand.u32 %s195, 1
        %s1377 = smul.addr %s1376, 8
        %s1378 = scalar_lea.vmem [#allocation4], %s1377
        %s1379 = sand.u32 %s223, 1
        %s1380 = scalar_lea.sflag [#allocation7], %s1379
        %s1381 = sand.u32 %s223, 1
        %s1382 = smul.addr %s1381, 8
        %s1383 = scalar_lea.vmem [#allocation6], %s1382
        // Predicated region
        $region45: #{attention_mlp.1} parent=43 // pred_check
          %p1384 = pneg %p205
        $region46: #{attention_mlp.1} parent=43 // pred_check_branch
          %1386 = sbr.rel (%p1384) target = $region48
        $region47: #{attention_mlp.1} parent=43 // pred_region
          %s1388 = ssub.s32 128, 128
          %1389 = vsyncadd %s1375, %s1388
          %s1390 = sadd.s32 %s30, %s29
          %s1391 = smul.addr %s1390, 128
          %s1392 = scalar_lea.hbm %s6, %s1391
          %s1394 = sshll.u32 %s1378, 4
          %s1395 = int_to_ptr.vmem [resolvable:$true] %s1394
          %1397 = dma.vmem_to_hbm [thread:$0]  %s1395, 128, %s1392, %s1375
        $region48: #{attention_mlp.1} parent=43 // pred_fallthru
          _
        // Predicated region
        $region49: #{attention_mlp.1} parent=43 // pred_check
          %p1398 = pneg %p233
        $region50: #{attention_mlp.1} parent=43 // pred_check_branch
          %1400 = sbr.rel (%p1398) target = $region52
        $region51: #{attention_mlp.1} parent=43 // pred_region
          %s1402 = ssub.s32 128, 128
          %1403 = vsyncadd %s1380, %s1402
          %s1404 = sadd.s32 %s30, %s29
          %s1405 = smul.addr %s1404, 128
          %s1406 = scalar_lea.hbm %s7, %s1405
          %s1408 = sshll.u32 %s1383, 4
          %s1409 = int_to_ptr.vmem [resolvable:$true] %s1408
          %1411 = dma.vmem_to_hbm [thread:$0]  %s1409, 128, %s1406, %s1380
        $region52: #{attention_mlp.1} parent=43 // pred_fallthru
          _
      $region44: #{attention_mlp.1} parent=5 // pred_fallthru
        _
      %p1412 = scmp.le.s32.totalorder 2, %s20
      // Predicated region
      $region53: #{attention_mlp.1} parent=5 // pred_check
        %p1413 = pneg %p1412
      $region54: #{attention_mlp.1} parent=5 // pred_check_branch
        %1415 = sbr.rel (%p1413) target = $region56
      $region55: #{attention_mlp.1} parent=5 // pred_region
        %s1416 = ssub.s32 %s20, 2
        // Predicated region
        $region57: #{attention_mlp.1} parent=55 // pred_check
          %p1417 = pneg %p211
        $region58: #{attention_mlp.1} parent=55 // pred_check_branch
          %1419 = sbr.rel (%p1417) target = $region60
        $region59: #{attention_mlp.1} parent=55 // pred_region
          %s1420 = sand.u32 %s196, 1
          %s1421 = scalar_lea.sflag [#allocation5], %s1420
          %s1422 = sand.u32 %s196, 1
          %s1423 = smul.addr %s1422, 8
          %s1424 = scalar_lea.vmem [#allocation4], %s1423
          %1425 = dma.done %s1421, 128
        $region60: #{attention_mlp.1} parent=55 // pred_fallthru
          _
        // Predicated region
        $region61: #{attention_mlp.1} parent=55 // pred_check
          %p1426 = pneg %p239
        $region62: #{attention_mlp.1} parent=55 // pred_check_branch
          %1428 = sbr.rel (%p1426) target = $region64
        $region63: #{attention_mlp.1} parent=55 // pred_region
          %s1429 = sand.u32 %s224, 1
          %s1430 = scalar_lea.sflag [#allocation7], %s1429
          %s1431 = sand.u32 %s224, 1
          %s1432 = smul.addr %s1431, 8
          %s1433 = scalar_lea.vmem [#allocation6], %s1432
          %1434 = dma.done %s1430, 128
        $region64: #{attention_mlp.1} parent=55 // pred_fallthru
          _
      $region56: #{attention_mlp.1} parent=5 // pred_fallthru
        _
    $region6: #{attention_mlp.1} parent=1 // loop_footer
      %s24 = sadd.s32 1, %s20
    $region7: #{attention_mlp.1} parent=1 // loop_footer_branch
      %19 = sbr.rel target = $region3
    $region8: #{attention_mlp.1} parent=1 // loop_exit
      _
    %1435 = vsyncpa [#allocation5], 1
    %s1436 = scalar_lea.sflag [#allocation5], 1
    %1437 = vsyncpa %s1436, 1
    %1438 = vsyncpa [#allocation7], 1
    %s1439 = scalar_lea.sflag [#allocation7], 1
    %1440 = vsyncpa %s1439, 1

</llo_original>
